<compile_context>
chip_gen: v6e
topology: v6e:2x2x1
jax: 0.10.0
libtpu: 0.0.40
codegen_flags: <defaults>
</compile_context>

<pallas_src>
import jax
import jax.numpy as jnp
from jax.experimental import pallas as pl
from jax.experimental.pallas import tpu as pltpu

LN_EPS = 1e-5
LEAKY_SLOPE = 0.2
ROW_ALIGN = 16  # bf16 sublane pack for the streamed x tile


def _round_up(x, m):
    return ((x + m - 1) // m) * m


def _layernorm(h, gamma, beta):
    # one-pass stats in f32: var = E[h^2] - mu^2
    inv_n = 1.0 / h.shape[-1]
    mu = jnp.sum(h, axis=-1, keepdims=True) * inv_n
    ms = jnp.sum(h * h, axis=-1, keepdims=True) * inv_n
    var = ms - mu * mu
    return (h - mu) * jax.lax.rsqrt(var + LN_EPS) * gamma + beta


def _leaky_relu(h):
    return jnp.where(h > 0, h, LEAKY_SLOPE * h)


def decoder_fc_kernel(x_ref,
                      w1_ref, b1_ref, g1_ref, be1_ref,
                      w2_ref, b2_ref, g2_ref, be2_ref,
                      w3_ref, b3_ref,
                      o_ref):
    # x tile streamed as bf16; sum-of-squares in f32 on the VPU/XLU.
    x = x_ref[...]
    xf = x.astype(jnp.float32)
    inv_norm1 = jax.lax.rsqrt(jnp.sum(xf * xf, axis=-1, keepdims=True))

    # --- mlp1: Linear on UN-normalized rows, l2-norm scale fused into the
    #     epilogue (exact: dot is linear per row), then LayerNorm + LeakyReLU.
    h = jnp.dot(x, w1_ref[...], preferred_element_type=jnp.float32)
    h = h * inv_norm1 + b1_ref[...]
    h = _leaky_relu(_layernorm(h, g1_ref[...], be1_ref[...]))

    # --- mlp2: same fused l2-norm-after-matmul trick.
    inv_norm2 = jax.lax.rsqrt(jnp.sum(h * h, axis=-1, keepdims=True))
    h2 = jnp.dot(h.astype(jnp.bfloat16), w2_ref[...],
                 preferred_element_type=jnp.float32)
    h2 = h2 * inv_norm2 + b2_ref[...]
    h2 = _leaky_relu(_layernorm(h2, g2_ref[...], be2_ref[...]))

    # --- mlp3: Linear (output columns zero-padded to a multiple of 128 lanes).
    out = jnp.dot(h2.astype(jnp.bfloat16), w3_ref[...],
                  preferred_element_type=jnp.float32) + b3_ref[...]
    o_ref[...] = out.astype(o_ref.dtype)


def _choose_tb(b):
    """Row tile: multiple of 16, up to 512 rows, and >=2 grid blocks when B
    is big enough so both v7x TensorCores get work on the 'parallel' axis."""
    b_al = _round_up(b, ROW_ALIGN)
    if b_al <= 2 * ROW_ALIGN:
        return b_al                                   # tiny batch: one block
    return min(512, _round_up((b_al + 1) // 2, ROW_ALIGN))


def prepare_params(params):
    """One-time (per-model) parameter prep, hoisted out of the per-call path:
       * Linear weights cast to bf16 (MXU-native),
       * w3/b3 output features zero-padded to a multiple of 128 (lane-dense store),
       * w1 input dim (matmul K) zero-padded to a multiple of 128."""
    d_in = params["w1"].shape[0]
    d_in_pad = _round_up(d_in, 128)
    w1 = params["w1"]
    if d_in_pad != d_in:
        w1 = jnp.pad(w1, ((0, d_in_pad - d_in), (0, 0)))

    out_dim = params["w3"].shape[1]
    out_pad = _round_up(out_dim, 128)
    w3, b3 = params["w3"], params["b3"]
    if out_pad != out_dim:
        w3 = jnp.pad(w3, ((0, 0), (0, out_pad - out_dim)))
        b3 = jnp.pad(b3, ((0, 0), (0, out_pad - out_dim)))

    return {
        "w1": w1.astype(jnp.bfloat16), "b1": params["b1"],
        "g1": params["g1"], "be1": params["be1"],
        "w2": params["w2"].astype(jnp.bfloat16), "b2": params["b2"],
        "g2": params["g2"], "be2": params["be2"],
        "w3": w3.astype(jnp.bfloat16), "b3": b3,
        "d_in": d_in, "out_dim": out_dim,
    }


def decoder_fc(x, p):
    """x: (B, D_in) float32. p: output of prepare_params."""
    B, d_in = x.shape
    assert d_in == p["d_in"], "input feature dim does not match prepared params"
    d_in_pad = p["w1"].shape[0]
    out_pad = p["w3"].shape[1]
    out_dim = p["out_dim"]

    TB = _choose_tb(B)
    n_blocks = pl.cdiv(B, TB)
    B_pad = n_blocks * TB

    # Pad K (zero columns: no effect on dot or sum-of-squares), then pad batch
    # rows with 1.0 so l2-norm on padded rows never hits rsqrt(0); stream bf16.
    if d_in_pad != d_in:
        x = jnp.pad(x, ((0, 0), (0, d_in_pad - d_in)))
    if B_pad != B:
        x = jnp.pad(x, ((0, B_pad - B), (0, 0)), constant_values=1.0)
    x = x.astype(jnp.bfloat16)

    args = (x,
            p["w1"], p["b1"], p["g1"], p["be1"],
            p["w2"], p["b2"], p["g2"], p["be2"],
            p["w3"], p["b3"])

    # weights / biases / LN params stay resident in VMEM across all batch tiles
    resident = lambda a: pl.BlockSpec(a.shape, lambda i: (0,) * a.ndim)

    out = pl.pallas_call(
        decoder_fc_kernel,
        out_shape=jax.ShapeDtypeStruct((B_pad, out_pad), jnp.float32),
        grid_spec=pltpu.PrefetchScalarGridSpec(
            num_scalar_prefetch=0,
            grid=(n_blocks,),
            in_specs=[pl.BlockSpec((TB, d_in_pad), lambda i: (i, 0))]
                     + [resident(a) for a in args[1:]],
            out_specs=pl.BlockSpec((TB, out_pad), lambda i: (i, 0)),
        ),
        compiler_params=pltpu.CompilerParams(
            dimension_semantics=("parallel",)),
    )(*args)

    return out[:B, :out_dim]


def decoder_fc_reference(x, p):
    """Pure-JAX reference mirroring the kernel's numerics (bf16 MXU operands,
    l2-norm scale applied after the matmul)."""
    d_in_pad = p["w1"].shape[0]
    if d_in_pad != x.shape[1]:
        x = jnp.pad(x, ((0, 0), (0, d_in_pad - x.shape[1])))
    xb = x.astype(jnp.bfloat16)
    xf = xb.astype(jnp.float32)

    inv1 = jax.lax.rsqrt(jnp.sum(xf * xf, axis=-1, keepdims=True))
    h = jnp.dot(xb, p["w1"], preferred_element_type=jnp.float32) * inv1 + p["b1"]
    h = _leaky_relu(_layernorm(h, p["g1"], p["be1"]))

    inv2 = jax.lax.rsqrt(jnp.sum(h * h, axis=-1, keepdims=True))
    h2 = jnp.dot(h.astype(jnp.bfloat16), p["w2"],
                 preferred_element_type=jnp.float32) * inv2 + p["b2"]
    h2 = _leaky_relu(_layernorm(h2, p["g2"], p["be2"]))

    out = jnp.dot(h2.astype(jnp.bfloat16), p["w3"],
                  preferred_element_type=jnp.float32) + p["b3"]
    return out[:, :p["out_dim"]]


def init_params(key, input_dim, hidden=512, output_pts=64):
    out_dim = output_pts * 3
    ks = jax.random.split(key, 6)
    scale = lambda fan_in: 1.0 / jnp.sqrt(fan_in)
    return {
        # Linear weights stored as (in, out) = PyTorch weight.T
        "w1": jax.random.normal(ks[0], (input_dim, hidden), jnp.float32) * scale(input_dim),
        "b1": jax.random.normal(ks[1], (1, hidden), jnp.float32) * 0.01,
        "g1": jnp.ones((1, hidden), jnp.float32),
        "be1": jnp.zeros((1, hidden), jnp.float32),
        "w2": jax.random.normal(ks[2], (hidden, hidden), jnp.float32) * scale(hidden),
        "b2": jax.random.normal(ks[3], (1, hidden), jnp.float32) * 0.01,
        "g2": jnp.ones((1, hidden), jnp.float32),
        "be2": jnp.zeros((1, hidden), jnp.float32),
        "w3": jax.random.normal(ks[4], (hidden, out_dim), jnp.float32) * scale(hidden),
        "b3": jax.random.normal(ks[5], (1, out_dim), jnp.float32) * 0.01,
    }


if __name__ == "__main__":
    key = jax.random.PRNGKey(0)
    kx, kp = jax.random.split(key)

    B, input_dim, output_pts = 2, 256, 64  # small synthetic shapes
    x = jax.random.normal(kx, (B, input_dim), jnp.float32)

    raw_params = init_params(kp, input_dim, hidden=512, output_pts=output_pts)
    params = prepare_params(raw_params)   # one-time: bf16 casts + out/K padding

    out = decoder_fc(x, params)
    out = jax.block_until_ready(out)

    ref = decoder_fc_reference(x, params)
    assert out.shape == (B, output_pts * 3)
    assert jnp.allclose(out, ref, atol=2e-2, rtol=2e-2), "mismatch vs reference"

    print("KERNEL_OK")
</pallas_src>

<mosaic_0001>
module attributes {stable_mosaic.version = 11 : i64} {
  func.func @decoder_fc_kernel(%arg0: i32, %arg1: memref<16x256xbf16, #tpu.memory_space<vmem>>, %arg2: memref<256x512xbf16, #tpu.memory_space<vmem>>, %arg3: memref<1x512xf32, #tpu.memory_space<vmem>>, %arg4: memref<1x512xf32, #tpu.memory_space<vmem>>, %arg5: memref<1x512xf32, #tpu.memory_space<vmem>>, %arg6: memref<512x512xbf16, #tpu.memory_space<vmem>>, %arg7: memref<1x512xf32, #tpu.memory_space<vmem>>, %arg8: memref<1x512xf32, #tpu.memory_space<vmem>>, %arg9: memref<1x512xf32, #tpu.memory_space<vmem>>, %arg10: memref<512x256xbf16, #tpu.memory_space<vmem>>, %arg11: memref<1x256xf32, #tpu.memory_space<vmem>>, %arg12: memref<16x256xf32, #tpu.memory_space<vmem>>) attributes {dimension_semantics = [#tpu.dimension_semantics<parallel>], iteration_bounds = array<i64: 1>, scalar_prefetch = 0 : i64, scratch_operands = 0 : i64, tpu.core_type = #tpu.core_type<tc>, window_params = [{transform_indices = @transform_0, window_bounds = array<i64: 16, 256>}, {pipeline_mode = #tpu.pipeline_mode<synchronous>, transform_indices = @transform_1, window_bounds = array<i64: 256, 512>}, {pipeline_mode = #tpu.pipeline_mode<synchronous>, transform_indices = @transform_2, window_bounds = array<i64: 1, 512>}, {pipeline_mode = #tpu.pipeline_mode<synchronous>, transform_indices = @transform_3, window_bounds = array<i64: 1, 512>}, {pipeline_mode = #tpu.pipeline_mode<synchronous>, transform_indices = @transform_4, window_bounds = array<i64: 1, 512>}, {pipeline_mode = #tpu.pipeline_mode<synchronous>, transform_indices = @transform_5, window_bounds = array<i64: 512, 512>}, {pipeline_mode = #tpu.pipeline_mode<synchronous>, transform_indices = @transform_6, window_bounds = array<i64: 1, 512>}, {pipeline_mode = #tpu.pipeline_mode<synchronous>, transform_indices = @transform_7, window_bounds = array<i64: 1, 512>}, {pipeline_mode = #tpu.pipeline_mode<synchronous>, transform_indices = @transform_8, window_bounds = array<i64: 1, 512>}, {pipeline_mode = #tpu.pipeline_mode<synchronous>, transform_indices = @transform_9, window_bounds = array<i64: 512, 256>}, {pipeline_mode = #tpu.pipeline_mode<synchronous>, transform_indices = @transform_10, window_bounds = array<i64: 1, 256>}, {transform_indices = @transform_11, window_bounds = array<i64: 16, 256>}]} {
    %c0 = arith.constant 0 : index
    %c0_0 = arith.constant 0 : index
    %0 = vector.load %arg1[%c0, %c0_0] : memref<16x256xbf16, #tpu.memory_space<vmem>>, vector<16x256xbf16>
    %1 = arith.extf %0 : vector<16x256xbf16> to vector<16x256xf32>
    %2 = arith.mulf %1, %1 : vector<16x256xf32>
    %cst = arith.constant dense<0.000000e+00> : vector<16xf32>
    %3 = vector.multi_reduction <add>, %2, %cst [1] : vector<16x256xf32> to vector<16xf32>
    %4 = vector.shape_cast %3 : vector<16xf32> to vector<16x1xf32>
    %5 = math.rsqrt %4 : vector<16x1xf32>
    %c0_1 = arith.constant 0 : index
    %c0_2 = arith.constant 0 : index
    %6 = vector.load %arg2[%c0_1, %c0_2] : memref<256x512xbf16, #tpu.memory_space<vmem>>, vector<256x512xbf16>
    %cst_3 = arith.constant dense<0.000000e+00> : vector<16x512xf32>
    %7 = tpu.matmul %0, %6, %cst_3 {dimension_numbers = #tpu.dot_dimension_numbers<[1], [0], [0], [1], [0, 0, 1, 1], [], []>} : vector<16x256xbf16>, vector<256x512xbf16>, vector<16x512xf32> -> vector<16x512xf32>
    %8 = vector.broadcast %5 : vector<16x1xf32> to vector<16x512xf32>
    %9 = arith.mulf %7, %8 : vector<16x512xf32>
    %c0_4 = arith.constant 0 : index
    %c0_5 = arith.constant 0 : index
    %10 = vector.load %arg3[%c0_4, %c0_5] : memref<1x512xf32, #tpu.memory_space<vmem>>, vector<1x512xf32>
    %11 = vector.broadcast %10 : vector<1x512xf32> to vector<16x512xf32>
    %12 = arith.addf %9, %11 : vector<16x512xf32>
    %c0_6 = arith.constant 0 : index
    %c0_7 = arith.constant 0 : index
    %13 = vector.load %arg4[%c0_6, %c0_7] : memref<1x512xf32, #tpu.memory_space<vmem>>, vector<1x512xf32>
    %c0_8 = arith.constant 0 : index
    %c0_9 = arith.constant 0 : index
    %14 = vector.load %arg5[%c0_8, %c0_9] : memref<1x512xf32, #tpu.memory_space<vmem>>, vector<1x512xf32>
    %cst_10 = arith.constant dense<0.000000e+00> : vector<16xf32>
    %15 = vector.multi_reduction <add>, %12, %cst_10 [1] : vector<16x512xf32> to vector<16xf32>
    %16 = vector.shape_cast %15 : vector<16xf32> to vector<16x1xf32>
    %cst_11 = arith.constant 0.001953125 : f32
    %17 = vector.broadcast %cst_11 : f32 to vector<16x1xf32>
    %18 = arith.mulf %16, %17 : vector<16x1xf32>
    %19 = arith.mulf %12, %12 : vector<16x512xf32>
    %cst_12 = arith.constant dense<0.000000e+00> : vector<16xf32>
    %20 = vector.multi_reduction <add>, %19, %cst_12 [1] : vector<16x512xf32> to vector<16xf32>
    %21 = vector.shape_cast %20 : vector<16xf32> to vector<16x1xf32>
    %cst_13 = arith.constant 0.001953125 : f32
    %22 = vector.broadcast %cst_13 : f32 to vector<16x1xf32>
    %23 = arith.mulf %21, %22 : vector<16x1xf32>
    %24 = arith.mulf %18, %18 : vector<16x1xf32>
    %25 = arith.subf %23, %24 : vector<16x1xf32>
    %26 = vector.broadcast %18 : vector<16x1xf32> to vector<16x512xf32>
    %27 = arith.subf %12, %26 : vector<16x512xf32>
    %cst_14 = arith.constant 9.99999974E-6 : f32
    %28 = vector.broadcast %cst_14 : f32 to vector<16x1xf32>
    %29 = arith.addf %25, %28 : vector<16x1xf32>
    %30 = math.rsqrt %29 : vector<16x1xf32>
    %31 = vector.broadcast %30 : vector<16x1xf32> to vector<16x512xf32>
    %32 = arith.mulf %27, %31 : vector<16x512xf32>
    %33 = vector.broadcast %13 : vector<1x512xf32> to vector<16x512xf32>
    %34 = arith.mulf %32, %33 : vector<16x512xf32>
    %35 = vector.broadcast %14 : vector<1x512xf32> to vector<16x512xf32>
    %36 = arith.addf %34, %35 : vector<16x512xf32>
    %cst_15 = arith.constant 0.000000e+00 : f32
    %37 = vector.broadcast %cst_15 : f32 to vector<16x512xf32>
    %38 = arith.cmpf ogt, %36, %37 : vector<16x512xf32>
    %cst_16 = arith.constant 2.000000e-01 : f32
    %39 = vector.broadcast %cst_16 : f32 to vector<16x512xf32>
    %40 = arith.mulf %39, %36 : vector<16x512xf32>
    %41 = arith.select %38, %36, %40 : vector<16x512xi1>, vector<16x512xf32>
    %42 = arith.mulf %41, %41 : vector<16x512xf32>
    %cst_17 = arith.constant dense<0.000000e+00> : vector<16xf32>
    %43 = vector.multi_reduction <add>, %42, %cst_17 [1] : vector<16x512xf32> to vector<16xf32>
    %44 = vector.shape_cast %43 : vector<16xf32> to vector<16x1xf32>
    %45 = math.rsqrt %44 : vector<16x1xf32>
    %46 = arith.truncf %41 : vector<16x512xf32> to vector<16x512xbf16>
    %c0_18 = arith.constant 0 : index
    %c0_19 = arith.constant 0 : index
    %47 = vector.load %arg6[%c0_18, %c0_19] : memref<512x512xbf16, #tpu.memory_space<vmem>>, vector<512x512xbf16>
    %cst_20 = arith.constant dense<0.000000e+00> : vector<16x512xf32>
    %48 = tpu.matmul %46, %47, %cst_20 {dimension_numbers = #tpu.dot_dimension_numbers<[1], [0], [0], [1], [0, 0, 1, 1], [], []>} : vector<16x512xbf16>, vector<512x512xbf16>, vector<16x512xf32> -> vector<16x512xf32>
    %49 = vector.broadcast %45 : vector<16x1xf32> to vector<16x512xf32>
    %50 = arith.mulf %48, %49 : vector<16x512xf32>
    %c0_21 = arith.constant 0 : index
    %c0_22 = arith.constant 0 : index
    %51 = vector.load %arg7[%c0_21, %c0_22] : memref<1x512xf32, #tpu.memory_space<vmem>>, vector<1x512xf32>
    %52 = vector.broadcast %51 : vector<1x512xf32> to vector<16x512xf32>
    %53 = arith.addf %50, %52 : vector<16x512xf32>
    %c0_23 = arith.constant 0 : index
    %c0_24 = arith.constant 0 : index
    %54 = vector.load %arg8[%c0_23, %c0_24] : memref<1x512xf32, #tpu.memory_space<vmem>>, vector<1x512xf32>
    %c0_25 = arith.constant 0 : index
    %c0_26 = arith.constant 0 : index
    %55 = vector.load %arg9[%c0_25, %c0_26] : memref<1x512xf32, #tpu.memory_space<vmem>>, vector<1x512xf32>
    %cst_27 = arith.constant dense<0.000000e+00> : vector<16xf32>
    %56 = vector.multi_reduction <add>, %53, %cst_27 [1] : vector<16x512xf32> to vector<16xf32>
    %57 = vector.shape_cast %56 : vector<16xf32> to vector<16x1xf32>
    %cst_28 = arith.constant 0.001953125 : f32
    %58 = vector.broadcast %cst_28 : f32 to vector<16x1xf32>
    %59 = arith.mulf %57, %58 : vector<16x1xf32>
    %60 = arith.mulf %53, %53 : vector<16x512xf32>
    %cst_29 = arith.constant dense<0.000000e+00> : vector<16xf32>
    %61 = vector.multi_reduction <add>, %60, %cst_29 [1] : vector<16x512xf32> to vector<16xf32>
    %62 = vector.shape_cast %61 : vector<16xf32> to vector<16x1xf32>
    %cst_30 = arith.constant 0.001953125 : f32
    %63 = vector.broadcast %cst_30 : f32 to vector<16x1xf32>
    %64 = arith.mulf %62, %63 : vector<16x1xf32>
    %65 = arith.mulf %59, %59 : vector<16x1xf32>
    %66 = arith.subf %64, %65 : vector<16x1xf32>
    %67 = vector.broadcast %59 : vector<16x1xf32> to vector<16x512xf32>
    %68 = arith.subf %53, %67 : vector<16x512xf32>
    %cst_31 = arith.constant 9.99999974E-6 : f32
    %69 = vector.broadcast %cst_31 : f32 to vector<16x1xf32>
    %70 = arith.addf %66, %69 : vector<16x1xf32>
    %71 = math.rsqrt %70 : vector<16x1xf32>
    %72 = vector.broadcast %71 : vector<16x1xf32> to vector<16x512xf32>
    %73 = arith.mulf %68, %72 : vector<16x512xf32>
    %74 = vector.broadcast %54 : vector<1x512xf32> to vector<16x512xf32>
    %75 = arith.mulf %73, %74 : vector<16x512xf32>
    %76 = vector.broadcast %55 : vector<1x512xf32> to vector<16x512xf32>
    %77 = arith.addf %75, %76 : vector<16x512xf32>
    %cst_32 = arith.constant 0.000000e+00 : f32
    %78 = vector.broadcast %cst_32 : f32 to vector<16x512xf32>
    %79 = arith.cmpf ogt, %77, %78 : vector<16x512xf32>
    %cst_33 = arith.constant 2.000000e-01 : f32
    %80 = vector.broadcast %cst_33 : f32 to vector<16x512xf32>
    %81 = arith.mulf %80, %77 : vector<16x512xf32>
    %82 = arith.select %79, %77, %81 : vector<16x512xi1>, vector<16x512xf32>
    %83 = arith.truncf %82 : vector<16x512xf32> to vector<16x512xbf16>
    %c0_34 = arith.constant 0 : index
    %c0_35 = arith.constant 0 : index
    %84 = vector.load %arg10[%c0_34, %c0_35] : memref<512x256xbf16, #tpu.memory_space<vmem>>, vector<512x256xbf16>
    %cst_36 = arith.constant dense<0.000000e+00> : vector<16x256xf32>
    %85 = tpu.matmul %83, %84, %cst_36 {dimension_numbers = #tpu.dot_dimension_numbers<[1], [0], [0], [1], [0, 0, 1, 1], [], []>} : vector<16x512xbf16>, vector<512x256xbf16>, vector<16x256xf32> -> vector<16x256xf32>
    %c0_37 = arith.constant 0 : index
    %c0_38 = arith.constant 0 : index
    %86 = vector.load %arg11[%c0_37, %c0_38] : memref<1x256xf32, #tpu.memory_space<vmem>>, vector<1x256xf32>
    %87 = vector.broadcast %86 : vector<1x256xf32> to vector<16x256xf32>
    %88 = arith.addf %85, %87 : vector<16x256xf32>
    %c0_39 = arith.constant 0 : index
    %c0_40 = arith.constant 0 : index
    %89 = vector.load %arg12[%c0_39, %c0_40] : memref<16x256xf32, #tpu.memory_space<vmem>>, vector<16x256xf32>
    tpu.vector_store %arg12[%c0_39, %c0_40], %88 {strides = array<i32>} : memref<16x256xf32, #tpu.memory_space<vmem>>, vector<16x256xf32>,
    return
  }
  func.func @transform_0(%arg0: i32) -> (i32, i32) {
    %c0_i32 = arith.constant 0 : i32
    %c0_i32_0 = arith.constant 0 : i32
    return %arg0, %c0_i32 : i32, i32
  }
  func.func @transform_1(%arg0: i32) -> (i32, i32) {
    %c0_i32 = arith.constant 0 : i32
    %c0_i32_0 = arith.constant 0 : i32
    %c0_i32_1 = arith.constant 0 : i32
    return %c0_i32, %c0_i32_0 : i32, i32
  }
  func.func @transform_2(%arg0: i32) -> (i32, i32) {
    %c0_i32 = arith.constant 0 : i32
    %c0_i32_0 = arith.constant 0 : i32
    %c0_i32_1 = arith.constant 0 : i32
    return %c0_i32, %c0_i32_0 : i32, i32
  }
  func.func @transform_3(%arg0: i32) -> (i32, i32) {
    %c0_i32 = arith.constant 0 : i32
    %c0_i32_0 = arith.constant 0 : i32
    %c0_i32_1 = arith.constant 0 : i32
    return %c0_i32, %c0_i32_0 : i32, i32
  }
  func.func @transform_4(%arg0: i32) -> (i32, i32) {
    %c0_i32 = arith.constant 0 : i32
    %c0_i32_0 = arith.constant 0 : i32
    %c0_i32_1 = arith.constant 0 : i32
    return %c0_i32, %c0_i32_0 : i32, i32
  }
  func.func @transform_5(%arg0: i32) -> (i32, i32) {
    %c0_i32 = arith.constant 0 : i32
    %c0_i32_0 = arith.constant 0 : i32
    %c0_i32_1 = arith.constant 0 : i32
    return %c0_i32, %c0_i32_0 : i32, i32
  }
  func.func @transform_6(%arg0: i32) -> (i32, i32) {
    %c0_i32 = arith.constant 0 : i32
    %c0_i32_0 = arith.constant 0 : i32
    %c0_i32_1 = arith.constant 0 : i32
    return %c0_i32, %c0_i32_0 : i32, i32
  }
  func.func @transform_7(%arg0: i32) -> (i32, i32) {
    %c0_i32 = arith.constant 0 : i32
    %c0_i32_0 = arith.constant 0 : i32
    %c0_i32_1 = arith.constant 0 : i32
    return %c0_i32, %c0_i32_0 : i32, i32
  }
  func.func @transform_8(%arg0: i32) -> (i32, i32) {
    %c0_i32 = arith.constant 0 : i32
    %c0_i32_0 = arith.constant 0 : i32
    %c0_i32_1 = arith.constant 0 : i32
    return %c0_i32, %c0_i32_0 : i32, i32
  }
  func.func @transform_9(%arg0: i32) -> (i32, i32) {
    %c0_i32 = arith.constant 0 : i32
    %c0_i32_0 = arith.constant 0 : i32
    %c0_i32_1 = arith.constant 0 : i32
    return %c0_i32, %c0_i32_0 : i32, i32
  }
  func.func @transform_10(%arg0: i32) -> (i32, i32) {
    %c0_i32 = arith.constant 0 : i32
    %c0_i32_0 = arith.constant 0 : i32
    %c0_i32_1 = arith.constant 0 : i32
    return %c0_i32, %c0_i32_0 : i32, i32
  }
  func.func @transform_11(%arg0: i32) -> (i32, i32) {
    %c0_i32 = arith.constant 0 : i32
    %c0_i32_0 = arith.constant 0 : i32
    return %arg0, %c0_i32 : i32, i32
  }
}

</mosaic_0001>

<llo_original>
// kernel: tpu_custom_call.1
$region0: #{tpu_custom_call.1}
  #allocation0 [shape = 'u32[]', space=smem, size = 0x4, offset = 0x4, fixed_abs, tag = 'smem constant byte address 0x4 - core index']
  #allocation1 [shape = 'u32[144,128]{1,0:T(1,128)}', space=vmem, size = 0x12000, scoped, tag = 'internal scratch']
  %s0 = inlined_call_operand.hbm [shape: bf16[16,256], index: 0, kind: input, shape index: {}]
  %s1 = inlined_call_operand.hbm [shape: bf16[256,512], index: 1, kind: input, shape index: {}]
  %s2 = inlined_call_operand.hbm [shape: f32[1,512], index: 2, kind: input, shape index: {}]
  %s3 = inlined_call_operand.vmem [shape: f32[1,512], index: 3, kind: input, shape index: {}]
  %s4 = inlined_call_operand.hbm [shape: f32[1,512], index: 4, kind: input, shape index: {}]
  %s5 = inlined_call_operand.hbm [shape: bf16[512,512], index: 5, kind: input, shape index: {}]
  %s6 = inlined_call_operand.vmem [shape: f32[1,512], index: 6, kind: input, shape index: {}]
  %s7 = inlined_call_operand.vmem [shape: f32[1,512], index: 7, kind: input, shape index: {}]
  %s8 = inlined_call_operand.hbm [shape: f32[1,512], index: 8, kind: input, shape index: {}]
  %s9 = inlined_call_operand.hbm [shape: bf16[512,256], index: 9, kind: input, shape index: {}]
  %s10 = inlined_call_operand.vmem [shape: f32[1,256], index: 10, kind: input, shape index: {}]
  %s11 = inlined_call_operand.hbm [shape: f32[16,256], index: 11, kind: output, shape index: {}]
  %s12 = sld [smem:[#allocation0]]
  $region82: #{tpu_custom_call.1} parent=0
    _
  %s14 = ssub.s32 1, %s12
  %s15 = scalar_select 0, %s14, %s12
  $region1: #{tpu_custom_call.1} parent=0
    #allocation2 [shape = 'u8[8192]{0}', space=vmem, size = 0x2000, scoped, tag = 'input window, operand 0, single buffered']
    #allocation3 [shape = 's32[1]{0}', space=sflag, size = 0x4, scoped, tag = 'scoped memory for tpu_custom_call.1']
    #allocation4 [shape = 's32[1]{0}', space=sflag, size = 0x4, scoped, tag = 'scoped memory for tpu_custom_call.1']
    #allocation5 [shape = 'u8[262144]{0}', space=vmem, size = 0x40000, scoped, tag = 'input window, operand 1, single buffered']
    #allocation6 [shape = 's32[1]{0}', space=sflag, size = 0x4, scoped, tag = 'scoped memory for tpu_custom_call.1']
    #allocation7 [shape = 'u8[2048]{0}', space=vmem, size = 0x800, scoped, tag = 'input window, operand 2, single buffered']
    #allocation8 [shape = 'u8[2048]{0}', space=vmem, size = 0x800, scoped, tag = 'input window, operand 4, single buffered']
    #allocation9 [shape = 's32[1]{0}', space=sflag, size = 0x4, scoped, tag = 'scoped memory for tpu_custom_call.1']
    #allocation10 [shape = 'u8[524288]{0}', space=vmem, size = 0x80000, scoped, tag = 'input window, operand 5, single buffered']
    #allocation11 [shape = 'u8[2048]{0}', space=vmem, size = 0x800, scoped, tag = 'input window, operand 8, single buffered']
    #allocation12 [shape = 's32[1]{0}', space=sflag, size = 0x4, scoped, tag = 'scoped memory for tpu_custom_call.1']
    #allocation13 [shape = 'u8[262144]{0}', space=vmem, size = 0x40000, scoped, tag = 'input window, operand 9, single buffered']
    #allocation14 [shape = 'u8[16384]{0}', space=vmem, size = 0x4000, scoped, tag = 'output window, operand 0, single buffered']
    %16 = vsyncpa [#allocation3], 0
    %17 = vsyncpa [#allocation6], 0
    %18 = vsyncpa [#allocation9], 0
    %19 = vsyncpa [#allocation12], 0
    %20 = vsyncpa [#allocation4], 0
    // Predicated region
    $region2: #{tpu_custom_call.1} parent=1 // pred_check
      _
    $region3: #{tpu_custom_call.1} parent=1 // pred_check_branch
      %22 = sbr.rel (0) target = $region5
    $region4: #{tpu_custom_call.1} parent=1 // pred_region
      %s24 = ssub.s32 256, 256
      %25 = vsyncadd [#allocation3], %s24
      %s26 = sshll.u32 [#allocation2], 4
      %s27 = int_to_ptr.vmem [resolvable:$true] %s26
      %32 = dma.hbm_to_vmem [thread:$0]  %s0, 256, %s27, [#allocation3], 128, 128, 8
    $region5: #{tpu_custom_call.1} parent=1 // pred_fallthru
      _
    // Predicated region
    $region6: #{tpu_custom_call.1} parent=1 // pred_check
      _
    $region7: #{tpu_custom_call.1} parent=1 // pred_check_branch
      %34 = sbr.rel (0) target = $region9
    $region8: #{tpu_custom_call.1} parent=1 // pred_region
      %s36 = ssub.s32 8192, 8192
      %37 = vsyncadd [#allocation6], %s36
      %s38 = sshll.u32 [#allocation5], 4
      %s39 = int_to_ptr.vmem [resolvable:$true] %s38
      %44 = dma.hbm_to_vmem [thread:$0]  %s1, 8192, %s39, [#allocation6], 256, 256, 16
    $region9: #{tpu_custom_call.1} parent=1 // pred_fallthru
      _
    // Predicated region
    $region10: #{tpu_custom_call.1} parent=1 // pred_check
      _
    $region11: #{tpu_custom_call.1} parent=1 // pred_check_branch
      %46 = sbr.rel (0) target = $region13
    $region12: #{tpu_custom_call.1} parent=1 // pred_region
      %s48 = ssub.s32 64, 64
      %49 = vsyncadd [#allocation6], %s48
      %s51 = sshll.u32 [#allocation7], 4
      %s52 = int_to_ptr.vmem [resolvable:$true] %s51
      %54 = dma.hbm_to_vmem [thread:$0]  %s2, 64, %s52, [#allocation6]
    $region13: #{tpu_custom_call.1} parent=1 // pred_fallthru
      _
    // Predicated region
    $region14: #{tpu_custom_call.1} parent=1 // pred_check
      _
    $region15: #{tpu_custom_call.1} parent=1 // pred_check_branch
      %56 = sbr.rel (0) target = $region17
    $region16: #{tpu_custom_call.1} parent=1 // pred_region
      _
    $region17: #{tpu_custom_call.1} parent=1 // pred_fallthru
      _
    // Predicated region
    $region18: #{tpu_custom_call.1} parent=1 // pred_check
      _
    $region19: #{tpu_custom_call.1} parent=1 // pred_check_branch
      %58 = sbr.rel (0) target = $region21
    $region20: #{tpu_custom_call.1} parent=1 // pred_region
      %s60 = ssub.s32 64, 64
      %61 = vsyncadd [#allocation9], %s60
      %s63 = sshll.u32 [#allocation8], 4
      %s64 = int_to_ptr.vmem [resolvable:$true] %s63
      %66 = dma.hbm_to_vmem [thread:$0]  %s4, 64, %s64, [#allocation9]
    $region21: #{tpu_custom_call.1} parent=1 // pred_fallthru
      _
    // Predicated region
    $region22: #{tpu_custom_call.1} parent=1 // pred_check
      _
    $region23: #{tpu_custom_call.1} parent=1 // pred_check_branch
      %68 = sbr.rel (0) target = $region25
    $region24: #{tpu_custom_call.1} parent=1 // pred_region
      %s70 = ssub.s32 16384, 16384
      %71 = vsyncadd [#allocation9], %s70
      %s72 = sshll.u32 [#allocation10], 4
      %s73 = int_to_ptr.vmem [resolvable:$true] %s72
      %78 = dma.hbm_to_vmem [thread:$0]  %s5, 16384, %s73, [#allocation9], 256, 256, 16
    $region25: #{tpu_custom_call.1} parent=1 // pred_fallthru
      _
    // Predicated region
    $region26: #{tpu_custom_call.1} parent=1 // pred_check
      _
    $region27: #{tpu_custom_call.1} parent=1 // pred_check_branch
      %80 = sbr.rel (0) target = $region29
    $region28: #{tpu_custom_call.1} parent=1 // pred_region
      _
    $region29: #{tpu_custom_call.1} parent=1 // pred_fallthru
      _
    // Predicated region
    $region30: #{tpu_custom_call.1} parent=1 // pred_check
      _
    $region31: #{tpu_custom_call.1} parent=1 // pred_check_branch
      %82 = sbr.rel (0) target = $region33
    $region32: #{tpu_custom_call.1} parent=1 // pred_region
      _
    $region33: #{tpu_custom_call.1} parent=1 // pred_fallthru
      _
    // Predicated region
    $region34: #{tpu_custom_call.1} parent=1 // pred_check
      _
    $region35: #{tpu_custom_call.1} parent=1 // pred_check_branch
      %84 = sbr.rel (0) target = $region37
    $region36: #{tpu_custom_call.1} parent=1 // pred_region
      %s86 = ssub.s32 64, 64
      %87 = vsyncadd [#allocation12], %s86
      %s89 = sshll.u32 [#allocation11], 4
      %s90 = int_to_ptr.vmem [resolvable:$true] %s89
      %92 = dma.hbm_to_vmem [thread:$0]  %s8, 64, %s90, [#allocation12]
    $region37: #{tpu_custom_call.1} parent=1 // pred_fallthru
      _
    // Predicated region
    $region38: #{tpu_custom_call.1} parent=1 // pred_check
      _
    $region39: #{tpu_custom_call.1} parent=1 // pred_check_branch
      %94 = sbr.rel (0) target = $region41
    $region40: #{tpu_custom_call.1} parent=1 // pred_region
      %s96 = ssub.s32 8192, 8192
      %97 = vsyncadd [#allocation12], %s96
      %s98 = sshll.u32 [#allocation13], 4
      %s99 = int_to_ptr.vmem [resolvable:$true] %s98
      %104 = dma.hbm_to_vmem [thread:$0]  %s9, 8192, %s99, [#allocation12], 128, 128, 8
    $region41: #{tpu_custom_call.1} parent=1 // pred_fallthru
      _
    // Predicated region
    $region42: #{tpu_custom_call.1} parent=1 // pred_check
      _
    $region43: #{tpu_custom_call.1} parent=1 // pred_check_branch
      %106 = sbr.rel (0) target = $region45
    $region44: #{tpu_custom_call.1} parent=1 // pred_region
      _
    $region45: #{tpu_custom_call.1} parent=1 // pred_fallthru
      _
    // Predicated region
    $region46: #{tpu_custom_call.1} parent=1 // pred_check
      _
    $region47: #{tpu_custom_call.1} parent=1 // pred_check_branch
      %108 = sbr.rel (0) target = $region49
    $region48: #{tpu_custom_call.1} parent=1 // pred_region
      %109 = dma.done [#allocation3], 256
    $region49: #{tpu_custom_call.1} parent=1 // pred_fallthru
      _
    // Predicated region
    $region50: #{tpu_custom_call.1} parent=1 // pred_check
      _
    $region51: #{tpu_custom_call.1} parent=1 // pred_check_branch
      %111 = sbr.rel (0) target = $region53
    $region52: #{tpu_custom_call.1} parent=1 // pred_region
      %112 = dma.done [#allocation6], 8192
    $region53: #{tpu_custom_call.1} parent=1 // pred_fallthru
      _
    // Predicated region
    $region54: #{tpu_custom_call.1} parent=1 // pred_check
      _
    $region55: #{tpu_custom_call.1} parent=1 // pred_check_branch
      %114 = sbr.rel (0) target = $region57
    $region56: #{tpu_custom_call.1} parent=1 // pred_region
      %115 = dma.done [#allocation6], 64
    $region57: #{tpu_custom_call.1} parent=1 // pred_fallthru
      _
    // Predicated region
    $region58: #{tpu_custom_call.1} parent=1 // pred_check
      _
    $region59: #{tpu_custom_call.1} parent=1 // pred_check_branch
      %117 = sbr.rel (0) target = $region61
    $region60: #{tpu_custom_call.1} parent=1 // pred_region
      %118 = dma.done [#allocation9], 64
    $region61: #{tpu_custom_call.1} parent=1 // pred_fallthru
      _
    // Predicated region
    $region62: #{tpu_custom_call.1} parent=1 // pred_check
      _
    $region63: #{tpu_custom_call.1} parent=1 // pred_check_branch
      %120 = sbr.rel (0) target = $region65
    $region64: #{tpu_custom_call.1} parent=1 // pred_region
      %121 = dma.done [#allocation9], 16384
    $region65: #{tpu_custom_call.1} parent=1 // pred_fallthru
      _
    // Predicated region
    $region66: #{tpu_custom_call.1} parent=1 // pred_check
      _
    $region67: #{tpu_custom_call.1} parent=1 // pred_check_branch
      %123 = sbr.rel (0) target = $region69
    $region68: #{tpu_custom_call.1} parent=1 // pred_region
      %124 = dma.done [#allocation12], 64
    $region69: #{tpu_custom_call.1} parent=1 // pred_fallthru
      _
    // Predicated region
    $region70: #{tpu_custom_call.1} parent=1 // pred_check
      _
    $region71: #{tpu_custom_call.1} parent=1 // pred_check_branch
      %126 = sbr.rel (0) target = $region73
    $region72: #{tpu_custom_call.1} parent=1 // pred_region
      %127 = dma.done [#allocation12], 8192
    $region73: #{tpu_custom_call.1} parent=1 // pred_fallthru
      _
    %v128 = vld [vmem:[#allocation2] sm:$0xff]
    %v129 = vld [vmem:[#allocation2 + $0x8] sm:$0xff]
    %v130 = vunpack.c.l.bf16 %v128
    %v131 = vunpack.c.h.bf16 %v128
    %v132 = vunpack.c.l.bf16 %v129
    %v133 = vunpack.c.h.bf16 %v129
    %v134 = vmul.f32 %v130, %v130
    %v135 = vmul.f32 %v131, %v131
    %v136 = vmul.f32 %v132, %v132
    %v137 = vmul.f32 %v133, %v133
    %v138 = vadd.f32 %v134, %v135
    %139 = vadd.xlane.f32.xlu0 %v138
    %v140 = vpop.xlane.xlu0 %139
    %v141 = vadd.f32 %v136, %v137
    %142 = vadd.xlane.f32.xlu0 %v141
    %v143 = vpop.xlane.xlu0 %142
    %v144 = vrsqrt.pop %v140
    %v145 = vrsqrt.pop %v143
    %v146 = vld [vmem:[#allocation5] sm:$0xff]
    %v147 = vld [vmem:[#allocation5 + $0x8] sm:$0xff]
    %v148 = vld [vmem:[#allocation5 + $0x10] sm:$0xff]
    %v149 = vld [vmem:[#allocation5 + $0x18] sm:$0xff]
    %v150 = vld [vmem:[#allocation5 + $0x20] sm:$0xff]
    %v151 = vld [vmem:[#allocation5 + $0x28] sm:$0xff]
    %v152 = vld [vmem:[#allocation5 + $0x30] sm:$0xff]
    %v153 = vld [vmem:[#allocation5 + $0x38] sm:$0xff]
    %v154 = vld [vmem:[#allocation5 + $0x40] sm:$0xff]
    %v155 = vld [vmem:[#allocation5 + $0x48] sm:$0xff]
    %v156 = vld [vmem:[#allocation5 + $0x50] sm:$0xff]
    %v157 = vld [vmem:[#allocation5 + $0x58] sm:$0xff]
    %v158 = vld [vmem:[#allocation5 + $0x60] sm:$0xff]
    %v159 = vld [vmem:[#allocation5 + $0x68] sm:$0xff]
    %v160 = vld [vmem:[#allocation5 + $0x70] sm:$0xff]
    %v161 = vld [vmem:[#allocation5 + $0x78] sm:$0xff]
    %v162 = vld [vmem:[#allocation5 + $0x80] sm:$0xff]
    %v163 = vld [vmem:[#allocation5 + $0x88] sm:$0xff]
    %v164 = vld [vmem:[#allocation5 + $0x90] sm:$0xff]
    %v165 = vld [vmem:[#allocation5 + $0x98] sm:$0xff]
    %v166 = vld [vmem:[#allocation5 + $0xa0] sm:$0xff]
    %v167 = vld [vmem:[#allocation5 + $0xa8] sm:$0xff]
    %v168 = vld [vmem:[#allocation5 + $0xb0] sm:$0xff]
    %v169 = vld [vmem:[#allocation5 + $0xb8] sm:$0xff]
    %v170 = vld [vmem:[#allocation5 + $0xc0] sm:$0xff]
    %v171 = vld [vmem:[#allocation5 + $0xc8] sm:$0xff]
    %v172 = vld [vmem:[#allocation5 + $0xd0] sm:$0xff]
    %v173 = vld [vmem:[#allocation5 + $0xd8] sm:$0xff]
    %v174 = vld [vmem:[#allocation5 + $0xe0] sm:$0xff]
    %v175 = vld [vmem:[#allocation5 + $0xe8] sm:$0xff]
    %v176 = vld [vmem:[#allocation5 + $0xf0] sm:$0xff]
    %v177 = vld [vmem:[#allocation5 + $0xf8] sm:$0xff]
    %v178 = vld [vmem:[#allocation5 + $0x100] sm:$0xff]
    %v179 = vld [vmem:[#allocation5 + $0x108] sm:$0xff]
    %v180 = vld [vmem:[#allocation5 + $0x110] sm:$0xff]
    %v181 = vld [vmem:[#allocation5 + $0x118] sm:$0xff]
    %v182 = vld [vmem:[#allocation5 + $0x120] sm:$0xff]
    %v183 = vld [vmem:[#allocation5 + $0x128] sm:$0xff]
    %v184 = vld [vmem:[#allocation5 + $0x130] sm:$0xff]
    %v185 = vld [vmem:[#allocation5 + $0x138] sm:$0xff]
    %v186 = vld [vmem:[#allocation5 + $0x140] sm:$0xff]
    %v187 = vld [vmem:[#allocation5 + $0x148] sm:$0xff]
    %v188 = vld [vmem:[#allocation5 + $0x150] sm:$0xff]
    %v189 = vld [vmem:[#allocation5 + $0x158] sm:$0xff]
    %v190 = vld [vmem:[#allocation5 + $0x160] sm:$0xff]
    %v191 = vld [vmem:[#allocation5 + $0x168] sm:$0xff]
    %v192 = vld [vmem:[#allocation5 + $0x170] sm:$0xff]
    %v193 = vld [vmem:[#allocation5 + $0x178] sm:$0xff]
    %v194 = vld [vmem:[#allocation5 + $0x180] sm:$0xff]
    %v195 = vld [vmem:[#allocation5 + $0x188] sm:$0xff]
    %v196 = vld [vmem:[#allocation5 + $0x190] sm:$0xff]
    %v197 = vld [vmem:[#allocation5 + $0x198] sm:$0xff]
    %v198 = vld [vmem:[#allocation5 + $0x1a0] sm:$0xff]
    %v199 = vld [vmem:[#allocation5 + $0x1a8] sm:$0xff]
    %v200 = vld [vmem:[#allocation5 + $0x1b0] sm:$0xff]
    %v201 = vld [vmem:[#allocation5 + $0x1b8] sm:$0xff]
    %v202 = vld [vmem:[#allocation5 + $0x1c0] sm:$0xff]
    %v203 = vld [vmem:[#allocation5 + $0x1c8] sm:$0xff]
    %v204 = vld [vmem:[#allocation5 + $0x1d0] sm:$0xff]
    %v205 = vld [vmem:[#allocation5 + $0x1d8] sm:$0xff]
    %v206 = vld [vmem:[#allocation5 + $0x1e0] sm:$0xff]
    %v207 = vld [vmem:[#allocation5 + $0x1e8] sm:$0xff]
    %v208 = vld [vmem:[#allocation5 + $0x1f0] sm:$0xff]
    %v209 = vld [vmem:[#allocation5 + $0x1f8] sm:$0xff]
    %v212 = vunpack.c.l.b16 %v128
    %v213 = vunpack.c.h.b16 %v128
    %v214 = vunpack.c.l.b16 %v129
    %v215 = vunpack.c.h.b16 %v129
    %v216 = vpack.c.b16 %v214, %v212
    %v217 = vpack.c.b16 %v215, %v213
    %v284 = vunpack.c.l.b16 %v146
    %v285 = vunpack.c.h.b16 %v146
    %v286 = vunpack.c.l.b16 %v147
    %v287 = vunpack.c.h.b16 %v147
    %v288 = vunpack.c.l.b16 %v148
    %v289 = vunpack.c.h.b16 %v148
    %v290 = vunpack.c.l.b16 %v149
    %v291 = vunpack.c.h.b16 %v149
    %v292 = vunpack.c.l.b16 %v150
    %v293 = vunpack.c.h.b16 %v150
    %v294 = vunpack.c.l.b16 %v151
    %v295 = vunpack.c.h.b16 %v151
    %v296 = vunpack.c.l.b16 %v152
    %v297 = vunpack.c.h.b16 %v152
    %v298 = vunpack.c.l.b16 %v153
    %v299 = vunpack.c.h.b16 %v153
    %v300 = vunpack.c.l.b16 %v154
    %v301 = vunpack.c.h.b16 %v154
    %v302 = vunpack.c.l.b16 %v155
    %v303 = vunpack.c.h.b16 %v155
    %v304 = vunpack.c.l.b16 %v156
    %v305 = vunpack.c.h.b16 %v156
    %v306 = vunpack.c.l.b16 %v157
    %v307 = vunpack.c.h.b16 %v157
    %v308 = vunpack.c.l.b16 %v158
    %v309 = vunpack.c.h.b16 %v158
    %v310 = vunpack.c.l.b16 %v159
    %v311 = vunpack.c.h.b16 %v159
    %v312 = vunpack.c.l.b16 %v160
    %v313 = vunpack.c.h.b16 %v160
    %v314 = vunpack.c.l.b16 %v161
    %v315 = vunpack.c.h.b16 %v161
    %v316 = vunpack.c.l.b16 %v162
    %v317 = vunpack.c.h.b16 %v162
    %v318 = vunpack.c.l.b16 %v163
    %v319 = vunpack.c.h.b16 %v163
    %v320 = vunpack.c.l.b16 %v164
    %v321 = vunpack.c.h.b16 %v164
    %v322 = vunpack.c.l.b16 %v165
    %v323 = vunpack.c.h.b16 %v165
    %v324 = vunpack.c.l.b16 %v166
    %v325 = vunpack.c.h.b16 %v166
    %v326 = vunpack.c.l.b16 %v167
    %v327 = vunpack.c.h.b16 %v167
    %v328 = vunpack.c.l.b16 %v168
    %v329 = vunpack.c.h.b16 %v168
    %v330 = vunpack.c.l.b16 %v169
    %v331 = vunpack.c.h.b16 %v169
    %v332 = vunpack.c.l.b16 %v170
    %v333 = vunpack.c.h.b16 %v170
    %v334 = vunpack.c.l.b16 %v171
    %v335 = vunpack.c.h.b16 %v171
    %v336 = vunpack.c.l.b16 %v172
    %v337 = vunpack.c.h.b16 %v172
    %v338 = vunpack.c.l.b16 %v173
    %v339 = vunpack.c.h.b16 %v173
    %v340 = vunpack.c.l.b16 %v174
    %v341 = vunpack.c.h.b16 %v174
    %v342 = vunpack.c.l.b16 %v175
    %v343 = vunpack.c.h.b16 %v175
    %v344 = vunpack.c.l.b16 %v176
    %v345 = vunpack.c.h.b16 %v176
    %v346 = vunpack.c.l.b16 %v177
    %v347 = vunpack.c.h.b16 %v177
    %v348 = vunpack.c.l.b16 %v178
    %v349 = vunpack.c.h.b16 %v178
    %v350 = vunpack.c.l.b16 %v179
    %v351 = vunpack.c.h.b16 %v179
    %v352 = vunpack.c.l.b16 %v180
    %v353 = vunpack.c.h.b16 %v180
    %v354 = vunpack.c.l.b16 %v181
    %v355 = vunpack.c.h.b16 %v181
    %v356 = vunpack.c.l.b16 %v182
    %v357 = vunpack.c.h.b16 %v182
    %v358 = vunpack.c.l.b16 %v183
    %v359 = vunpack.c.h.b16 %v183
    %v360 = vunpack.c.l.b16 %v184
    %v361 = vunpack.c.h.b16 %v184
    %v362 = vunpack.c.l.b16 %v185
    %v363 = vunpack.c.h.b16 %v185
    %v364 = vunpack.c.l.b16 %v186
    %v365 = vunpack.c.h.b16 %v186
    %v366 = vunpack.c.l.b16 %v187
    %v367 = vunpack.c.h.b16 %v187
    %v368 = vunpack.c.l.b16 %v188
    %v369 = vunpack.c.h.b16 %v188
    %v370 = vunpack.c.l.b16 %v189
    %v371 = vunpack.c.h.b16 %v189
    %v372 = vunpack.c.l.b16 %v190
    %v373 = vunpack.c.h.b16 %v190
    %v374 = vunpack.c.l.b16 %v191
    %v375 = vunpack.c.h.b16 %v191
    %v376 = vunpack.c.l.b16 %v192
    %v377 = vunpack.c.h.b16 %v192
    %v378 = vunpack.c.l.b16 %v193
    %v379 = vunpack.c.h.b16 %v193
    %v380 = vunpack.c.l.b16 %v194
    %v381 = vunpack.c.h.b16 %v194
    %v382 = vunpack.c.l.b16 %v195
    %v383 = vunpack.c.h.b16 %v195
    %v384 = vunpack.c.l.b16 %v196
    %v385 = vunpack.c.h.b16 %v196
    %v386 = vunpack.c.l.b16 %v197
    %v387 = vunpack.c.h.b16 %v197
    %v388 = vunpack.c.l.b16 %v198
    %v389 = vunpack.c.h.b16 %v198
    %v390 = vunpack.c.l.b16 %v199
    %v391 = vunpack.c.h.b16 %v199
    %v392 = vunpack.c.l.b16 %v200
    %v393 = vunpack.c.h.b16 %v200
    %v394 = vunpack.c.l.b16 %v201
    %v395 = vunpack.c.h.b16 %v201
    %v396 = vunpack.c.l.b16 %v202
    %v397 = vunpack.c.h.b16 %v202
    %v398 = vunpack.c.l.b16 %v203
    %v399 = vunpack.c.h.b16 %v203
    %v400 = vunpack.c.l.b16 %v204
    %v401 = vunpack.c.h.b16 %v204
    %v402 = vunpack.c.l.b16 %v205
    %v403 = vunpack.c.h.b16 %v205
    %v404 = vunpack.c.l.b16 %v206
    %v405 = vunpack.c.h.b16 %v206
    %v406 = vunpack.c.l.b16 %v207
    %v407 = vunpack.c.h.b16 %v207
    %v408 = vunpack.c.l.b16 %v208
    %v409 = vunpack.c.h.b16 %v208
    %v410 = vunpack.c.l.b16 %v209
    %v411 = vunpack.c.h.b16 %v209
    %v412 = vpack.c.b16 %v288, %v284
    %v413 = vpack.c.b16 %v289, %v285
    %v414 = vpack.c.b16 %v290, %v286
    %v415 = vpack.c.b16 %v291, %v287
    %v416 = vpack.c.b16 %v296, %v292
    %v417 = vpack.c.b16 %v297, %v293
    %v418 = vpack.c.b16 %v298, %v294
    %v419 = vpack.c.b16 %v299, %v295
    %v420 = vpack.c.b16 %v304, %v300
    %v421 = vpack.c.b16 %v305, %v301
    %v422 = vpack.c.b16 %v306, %v302
    %v423 = vpack.c.b16 %v307, %v303
    %v424 = vpack.c.b16 %v312, %v308
    %v425 = vpack.c.b16 %v313, %v309
    %v426 = vpack.c.b16 %v314, %v310
    %v427 = vpack.c.b16 %v315, %v311
    %v428 = vpack.c.b16 %v320, %v316
    %v429 = vpack.c.b16 %v321, %v317
    %v430 = vpack.c.b16 %v322, %v318
    %v431 = vpack.c.b16 %v323, %v319
    %v432 = vpack.c.b16 %v328, %v324
    %v433 = vpack.c.b16 %v329, %v325
    %v434 = vpack.c.b16 %v330, %v326
    %v435 = vpack.c.b16 %v331, %v327
    %v436 = vpack.c.b16 %v336, %v332
    %v437 = vpack.c.b16 %v337, %v333
    %v438 = vpack.c.b16 %v338, %v334
    %v439 = vpack.c.b16 %v339, %v335
    %v440 = vpack.c.b16 %v344, %v340
    %v441 = vpack.c.b16 %v345, %v341
    %v442 = vpack.c.b16 %v346, %v342
    %v443 = vpack.c.b16 %v347, %v343
    %v444 = vpack.c.b16 %v352, %v348
    %v445 = vpack.c.b16 %v353, %v349
    %v446 = vpack.c.b16 %v354, %v350
    %v447 = vpack.c.b16 %v355, %v351
    %v448 = vpack.c.b16 %v360, %v356
    %v449 = vpack.c.b16 %v361, %v357
    %v450 = vpack.c.b16 %v362, %v358
    %v451 = vpack.c.b16 %v363, %v359
    %v452 = vpack.c.b16 %v368, %v364
    %v453 = vpack.c.b16 %v369, %v365
    %v454 = vpack.c.b16 %v370, %v366
    %v455 = vpack.c.b16 %v371, %v367
    %v456 = vpack.c.b16 %v376, %v372
    %v457 = vpack.c.b16 %v377, %v373
    %v458 = vpack.c.b16 %v378, %v374
    %v459 = vpack.c.b16 %v379, %v375
    %v460 = vpack.c.b16 %v384, %v380
    %v461 = vpack.c.b16 %v385, %v381
    %v462 = vpack.c.b16 %v386, %v382
    %v463 = vpack.c.b16 %v387, %v383
    %v464 = vpack.c.b16 %v392, %v388
    %v465 = vpack.c.b16 %v393, %v389
    %v466 = vpack.c.b16 %v394, %v390
    %v467 = vpack.c.b16 %v395, %v391
    %v468 = vpack.c.b16 %v400, %v396
    %v469 = vpack.c.b16 %v401, %v397
    %v470 = vpack.c.b16 %v402, %v398
    %v471 = vpack.c.b16 %v403, %v399
    %v472 = vpack.c.b16 %v408, %v404
    %v473 = vpack.c.b16 %v409, %v405
    %v474 = vpack.c.b16 %v410, %v406
    %v475 = vpack.c.b16 %v411, %v407
    %540 = vmatprep.subr.bf16.mxu0 %v441
    %541 = vmatpush1.bf16.msra.mxu0 %v440
    %542 = vmatprep.subr.bf16.mxu0 %v437
    %543 = vmatpush1.bf16.msra.mxu0 %v436
    %544 = vmatprep.subr.bf16.mxu0 %v433
    %545 = vmatpush1.bf16.msra.mxu0 %v432
    %546 = vmatprep.subr.bf16.mxu0 %v429
    %547 = vmatpush1.bf16.msra.mxu0 %v428
    %548 = vmatprep.subr.bf16.mxu0 %v425
    %549 = vmatpush1.bf16.msra.mxu0 %v424
    %550 = vmatprep.subr.bf16.mxu0 %v421
    %551 = vmatpush1.bf16.msra.mxu0 %v420
    %552 = vmatprep.subr.bf16.mxu0 %v417
    %553 = vmatpush1.bf16.msra.mxu0 %v416
    %554 = vmatprep.subr.bf16.mxu0 %v413
    %555 = vmatpush1.bf16.msra.mxu0 %v412
    %556 = vmatprep.subr.bf16.mxu0 %v473
    %557 = vmatpush2.bf16.msra.mxu0 %v472
    %558 = vmatprep.subr.bf16.mxu0 %v469
    %559 = vmatpush2.bf16.msra.mxu0 %v468
    %560 = vmatprep.subr.bf16.mxu0 %v465
    %561 = vmatpush2.bf16.msra.mxu0 %v464
    %562 = vmatprep.subr.bf16.mxu0 %v461
    %563 = vmatpush2.bf16.msra.mxu0 %v460
    %564 = vmatprep.subr.bf16.mxu0 %v457
    %565 = vmatpush2.bf16.msra.mxu0 %v456
    %566 = vmatprep.subr.bf16.mxu0 %v453
    %567 = vmatpush2.bf16.msra.mxu0 %v452
    %568 = vmatprep.subr.bf16.mxu0 %v449
    %569 = vmatpush2.bf16.msra.mxu0 %v448
    %570 = vmatprep.subr.bf16.mxu0 %v445
    %571 = vmatpush2.bf16.msra.mxu0 %v444
    %572 = vmatprep.mubr.bf16.mxu0 %v217
    %573 = vmatmul.mubr.bf16.gmra.mxu0 %v216
    %v574 = vpop.f32.mrf.mxu0
    %v575 = vadd.f32 0.0, %v574
    %v576 = vpop.f32.mrf.mxu0
    %v577 = vadd.f32 0.0, %v576
    %v578 = vpop.f32.mrf.mxu0
    %v579 = vadd.f32 0.0, %v578
    %v580 = vpop.f32.mrf.mxu0
    %v581 = vadd.f32 0.0, %v580
    %582 = vdwg.mxu0
    %583 = vmatprep.subr.bf16.mxu0 %v443
    %584 = vmatpush1.bf16.msra.mxu0 %v442
    %585 = vmatprep.subr.bf16.mxu0 %v439
    %586 = vmatpush1.bf16.msra.mxu0 %v438
    %587 = vmatprep.subr.bf16.mxu0 %v435
    %588 = vmatpush1.bf16.msra.mxu0 %v434
    %589 = vmatprep.subr.bf16.mxu0 %v431
    %590 = vmatpush1.bf16.msra.mxu0 %v430
    %591 = vmatprep.subr.bf16.mxu0 %v427
    %592 = vmatpush1.bf16.msra.mxu0 %v426
    %593 = vmatprep.subr.bf16.mxu0 %v423
    %594 = vmatpush1.bf16.msra.mxu0 %v422
    %595 = vmatprep.subr.bf16.mxu0 %v419
    %596 = vmatpush1.bf16.msra.mxu0 %v418
    %597 = vmatprep.subr.bf16.mxu0 %v415
    %598 = vmatpush1.bf16.msra.mxu0 %v414
    %599 = vmatprep.subr.bf16.mxu0 %v475
    %600 = vmatpush2.bf16.msra.mxu0 %v474
    %601 = vmatprep.subr.bf16.mxu0 %v471
    %602 = vmatpush2.bf16.msra.mxu0 %v470
    %603 = vmatprep.subr.bf16.mxu0 %v467
    %604 = vmatpush2.bf16.msra.mxu0 %v466
    %605 = vmatprep.subr.bf16.mxu0 %v463
    %606 = vmatpush2.bf16.msra.mxu0 %v462
    %607 = vmatprep.subr.bf16.mxu0 %v459
    %608 = vmatpush2.bf16.msra.mxu0 %v458
    %609 = vmatprep.subr.bf16.mxu0 %v455
    %610 = vmatpush2.bf16.msra.mxu0 %v454
    %611 = vmatprep.subr.bf16.mxu0 %v451
    %612 = vmatpush2.bf16.msra.mxu0 %v450
    %613 = vmatprep.subr.bf16.mxu0 %v447
    %614 = vmatpush2.bf16.msra.mxu0 %v446
    %615 = vmatprep.mubr.bf16.mxu0 %v217
    %616 = vmatmul.mubr.bf16.gmra.mxu0 %v216
    %v617 = vpop.f32.mrf.mxu0
    %v618 = vadd.f32 0.0, %v617
    %v619 = vpop.f32.mrf.mxu0
    %v620 = vadd.f32 0.0, %v619
    %v621 = vpop.f32.mrf.mxu0
    %v622 = vadd.f32 0.0, %v621
    %v623 = vpop.f32.mrf.mxu0
    %v624 = vadd.f32 0.0, %v623
    %625 = vdwg.mxu0
    %v626 = vmul.f32 %v575, %v144
    %v627 = vmul.f32 %v577, %v144
    %v628 = vmul.f32 %v618, %v144
    %v629 = vmul.f32 %v620, %v144
    %v630 = vmul.f32 %v579, %v145
    %v631 = vmul.f32 %v581, %v145
    %v632 = vmul.f32 %v622, %v145
    %v633 = vmul.f32 %v624, %v145
    %v634 = vld [vmem:[#allocation7] sm:$0xf]
    %v636 = vlaneseq
    %v637 = vshrl.u32 %v636, 7
    %v638 = vsub.s32 0, %v637
    %v639 = vrot.slane %v634, %v638
    %v640 = vlaneseq
    %v641 = vshrl.u32 %v640, 7
    %v642 = vsub.s32 1, %v641
    %v643 = vrot.slane %v634, %v642
    %v644 = vlaneseq
    %v645 = vshrl.u32 %v644, 7
    %v646 = vsub.s32 2, %v645
    %v647 = vrot.slane %v634, %v646
    %v648 = vlaneseq
    %v649 = vshrl.u32 %v648, 7
    %v650 = vsub.s32 3, %v649
    %v651 = vrot.slane %v634, %v650
    %v656 = vadd.f32 %v626, %v639
    %v657 = vadd.f32 %v627, %v643
    %v658 = vadd.f32 %v628, %v647
    %v659 = vadd.f32 %v629, %v651
    %v660 = vadd.f32 %v630, %v639
    %v661 = vadd.f32 %v631, %v643
    %v662 = vadd.f32 %v632, %v647
    %v663 = vadd.f32 %v633, %v651
    %v664 = vld [vmem:[%s3] sm:$0xf]
    %v665 = vld [vmem:[#allocation8] sm:$0xf]
    %v666 = vadd.f32 %v656, %v657
    %v667 = vadd.f32 %v666, %v658
    %v668 = vadd.f32 %v667, %v659
    %669 = vadd.xlane.f32.xlu0 %v668
    %v670 = vpop.xlane.xlu0 %669
    %v671 = vadd.f32 %v660, %v661
    %v672 = vadd.f32 %v671, %v662
    %v673 = vadd.f32 %v672, %v663
    %674 = vadd.xlane.f32.xlu0 %v673
    %v675 = vpop.xlane.xlu0 %674
    %v676 = vmul.f32 %v670, 0.001953125
    %v677 = vmul.f32 %v675, 0.001953125
    %v678 = vmul.f32 %v656, %v656
    %v679 = vmul.f32 %v657, %v657
    %v680 = vmul.f32 %v658, %v658
    %v681 = vmul.f32 %v659, %v659
    %v682 = vmul.f32 %v660, %v660
    %v683 = vmul.f32 %v661, %v661
    %v684 = vmul.f32 %v662, %v662
    %v685 = vmul.f32 %v663, %v663
    %v686 = vadd.f32 %v678, %v679
    %v687 = vadd.f32 %v686, %v680
    %v688 = vadd.f32 %v687, %v681
    %689 = vadd.xlane.f32.xlu0 %v688
    %v690 = vpop.xlane.xlu0 %689
    %v691 = vadd.f32 %v682, %v683
    %v692 = vadd.f32 %v691, %v684
    %v693 = vadd.f32 %v692, %v685
    %694 = vadd.xlane.f32.xlu0 %v693
    %v695 = vpop.xlane.xlu0 %694
    %v696 = vmul.f32 %v690, 0.001953125
    %v697 = vmul.f32 %v695, 0.001953125
    %v698 = vmul.f32 %v676, %v676
    %v699 = vmul.f32 %v677, %v677
    %v700 = vsub.f32 %v696, %v698
    %v701 = vsub.f32 %v697, %v699
    %v702 = vsub.f32 %v656, %v676
    %v703 = vsub.f32 %v657, %v676
    %v704 = vsub.f32 %v658, %v676
    %v705 = vsub.f32 %v659, %v676
    %v706 = vsub.f32 %v660, %v677
    %v707 = vsub.f32 %v661, %v677
    %v708 = vsub.f32 %v662, %v677
    %v709 = vsub.f32 %v663, %v677
    %v710 = vadd.f32 %v700, 1e-05
    %v711 = vadd.f32 %v701, 1e-05
    %v712 = vrsqrt.pop %v710
    %v713 = vrsqrt.pop %v711
    %v714 = vmul.f32 %v702, %v712
    %v715 = vmul.f32 %v703, %v712
    %v716 = vmul.f32 %v704, %v712
    %v717 = vmul.f32 %v705, %v712
    %v718 = vmul.f32 %v706, %v713
    %v719 = vmul.f32 %v707, %v713
    %v720 = vmul.f32 %v708, %v713
    %v721 = vmul.f32 %v709, %v713
    %v723 = vlaneseq
    %v724 = vshrl.u32 %v723, 7
    %v725 = vsub.s32 0, %v724
    %v726 = vrot.slane %v664, %v725
    %v727 = vlaneseq
    %v728 = vshrl.u32 %v727, 7
    %v729 = vsub.s32 1, %v728
    %v730 = vrot.slane %v664, %v729
    %v731 = vlaneseq
    %v732 = vshrl.u32 %v731, 7
    %v733 = vsub.s32 2, %v732
    %v734 = vrot.slane %v664, %v733
    %v735 = vlaneseq
    %v736 = vshrl.u32 %v735, 7
    %v737 = vsub.s32 3, %v736
    %v738 = vrot.slane %v664, %v737
    %v743 = vmul.f32 %v714, %v726
    %v744 = vmul.f32 %v715, %v730
    %v745 = vmul.f32 %v716, %v734
    %v746 = vmul.f32 %v717, %v738
    %v747 = vmul.f32 %v718, %v726
    %v748 = vmul.f32 %v719, %v730
    %v749 = vmul.f32 %v720, %v734
    %v750 = vmul.f32 %v721, %v738
    %v752 = vlaneseq
    %v753 = vshrl.u32 %v752, 7
    %v754 = vsub.s32 0, %v753
    %v755 = vrot.slane %v665, %v754
    %v756 = vlaneseq
    %v757 = vshrl.u32 %v756, 7
    %v758 = vsub.s32 1, %v757
    %v759 = vrot.slane %v665, %v758
    %v760 = vlaneseq
    %v761 = vshrl.u32 %v760, 7
    %v762 = vsub.s32 2, %v761
    %v763 = vrot.slane %v665, %v762
    %v764 = vlaneseq
    %v765 = vshrl.u32 %v764, 7
    %v766 = vsub.s32 3, %v765
    %v767 = vrot.slane %v665, %v766
    %v772 = vadd.f32 %v743, %v755
    %v773 = vadd.f32 %v744, %v759
    %v774 = vadd.f32 %v745, %v763
    %v775 = vadd.f32 %v746, %v767
    %v776 = vadd.f32 %v747, %v755
    %v777 = vadd.f32 %v748, %v759
    %v778 = vadd.f32 %v749, %v763
    %v779 = vadd.f32 %v750, %v767
    %vm780 = vcmp.gt.f32.partialorder %v772, 0.0
    %vm781 = vcmp.gt.f32.partialorder %v773, 0.0
    %vm782 = vcmp.gt.f32.partialorder %v774, 0.0
    %vm783 = vcmp.gt.f32.partialorder %v775, 0.0
    %vm784 = vcmp.gt.f32.partialorder %v776, 0.0
    %vm785 = vcmp.gt.f32.partialorder %v777, 0.0
    %vm786 = vcmp.gt.f32.partialorder %v778, 0.0
    %vm787 = vcmp.gt.f32.partialorder %v779, 0.0
    %v788 = vmul.f32 %v772, 0.2
    %v789 = vmul.f32 %v773, 0.2
    %v790 = vmul.f32 %v774, 0.2
    %v791 = vmul.f32 %v775, 0.2
    %v792 = vmul.f32 %v776, 0.2
    %v793 = vmul.f32 %v777, 0.2
    %v794 = vmul.f32 %v778, 0.2
    %v795 = vmul.f32 %v779, 0.2
    %v796 = vsel %vm780, %v772, %v788
    %v797 = vsel %vm781, %v773, %v789
    %v798 = vsel %vm782, %v774, %v790
    %v799 = vsel %vm783, %v775, %v791
    %v800 = vsel %vm784, %v776, %v792
    %v801 = vsel %vm785, %v777, %v793
    %v802 = vsel %vm786, %v778, %v794
    %v803 = vsel %vm787, %v779, %v795
    %v804 = vmul.f32 %v796, %v796
    %v805 = vmul.f32 %v797, %v797
    %v806 = vmul.f32 %v798, %v798
    %v807 = vmul.f32 %v799, %v799
    %v808 = vmul.f32 %v800, %v800
    %v809 = vmul.f32 %v801, %v801
    %v810 = vmul.f32 %v802, %v802
    %v811 = vmul.f32 %v803, %v803
    %v812 = vadd.f32 %v804, %v805
    %v813 = vadd.f32 %v812, %v806
    %v814 = vadd.f32 %v813, %v807
    %815 = vadd.xlane.f32.xlu0 %v814
    %v816 = vpop.xlane.xlu0 %815
    %v817 = vadd.f32 %v808, %v809
    %v818 = vadd.f32 %v817, %v810
    %v819 = vadd.f32 %v818, %v811
    %820 = vadd.xlane.f32.xlu0 %v819
    %v821 = vpop.xlane.xlu0 %820
    %v822 = vrsqrt.pop %v816
    %v823 = vrsqrt.pop %v821
    %v824 = vpack.c.bf16 %v800, %v796
    %v825 = vpack.c.bf16 %v801, %v797
    %v826 = vpack.c.bf16 %v802, %v798
    %v827 = vpack.c.bf16 %v803, %v799
    %v828 = vld [vmem:[#allocation10] sm:$0xff]
    %v829 = vld [vmem:[#allocation10 + $0x8] sm:$0xff]
    %v830 = vld [vmem:[#allocation10 + $0x10] sm:$0xff]
    %v831 = vld [vmem:[#allocation10 + $0x18] sm:$0xff]
    %v832 = vld [vmem:[#allocation10 + $0x20] sm:$0xff]
    %v833 = vld [vmem:[#allocation10 + $0x28] sm:$0xff]
    %v834 = vld [vmem:[#allocation10 + $0x30] sm:$0xff]
    %v835 = vld [vmem:[#allocation10 + $0x38] sm:$0xff]
    %v836 = vld [vmem:[#allocation10 + $0x40] sm:$0xff]
    %v837 = vld [vmem:[#allocation10 + $0x48] sm:$0xff]
    %v838 = vld [vmem:[#allocation10 + $0x50] sm:$0xff]
    %v839 = vld [vmem:[#allocation10 + $0x58] sm:$0xff]
    %v840 = vld [vmem:[#allocation10 + $0x60] sm:$0xff]
    %v841 = vld [vmem:[#allocation10 + $0x68] sm:$0xff]
    %v842 = vld [vmem:[#allocation10 + $0x70] sm:$0xff]
    %v843 = vld [vmem:[#allocation10 + $0x78] sm:$0xff]
    %v844 = vld [vmem:[#allocation10 + $0x80] sm:$0xff]
    %v845 = vld [vmem:[#allocation10 + $0x88] sm:$0xff]
    %v846 = vld [vmem:[#allocation10 + $0x90] sm:$0xff]
    %v847 = vld [vmem:[#allocation10 + $0x98] sm:$0xff]
    %v848 = vld [vmem:[#allocation10 + $0xa0] sm:$0xff]
    %v849 = vld [vmem:[#allocation10 + $0xa8] sm:$0xff]
    %v850 = vld [vmem:[#allocation10 + $0xb0] sm:$0xff]
    %v851 = vld [vmem:[#allocation10 + $0xb8] sm:$0xff]
    %v852 = vld [vmem:[#allocation10 + $0xc0] sm:$0xff]
    %v853 = vld [vmem:[#allocation10 + $0xc8] sm:$0xff]
    %v854 = vld [vmem:[#allocation10 + $0xd0] sm:$0xff]
    %v855 = vld [vmem:[#allocation10 + $0xd8] sm:$0xff]
    %v856 = vld [vmem:[#allocation10 + $0xe0] sm:$0xff]
    %v857 = vld [vmem:[#allocation10 + $0xe8] sm:$0xff]
    %v858 = vld [vmem:[#allocation10 + $0xf0] sm:$0xff]
    %v859 = vld [vmem:[#allocation10 + $0xf8] sm:$0xff]
    %v860 = vld [vmem:[#allocation10 + $0x100] sm:$0xff]
    %v861 = vld [vmem:[#allocation10 + $0x108] sm:$0xff]
    %v862 = vld [vmem:[#allocation10 + $0x110] sm:$0xff]
    %v863 = vld [vmem:[#allocation10 + $0x118] sm:$0xff]
    %v864 = vld [vmem:[#allocation10 + $0x120] sm:$0xff]
    %v865 = vld [vmem:[#allocation10 + $0x128] sm:$0xff]
    %v866 = vld [vmem:[#allocation10 + $0x130] sm:$0xff]
    %v867 = vld [vmem:[#allocation10 + $0x138] sm:$0xff]
    %v868 = vld [vmem:[#allocation10 + $0x140] sm:$0xff]
    %v869 = vld [vmem:[#allocation10 + $0x148] sm:$0xff]
    %v870 = vld [vmem:[#allocation10 + $0x150] sm:$0xff]
    %v871 = vld [vmem:[#allocation10 + $0x158] sm:$0xff]
    %v872 = vld [vmem:[#allocation10 + $0x160] sm:$0xff]
    %v873 = vld [vmem:[#allocation10 + $0x168] sm:$0xff]
    %v874 = vld [vmem:[#allocation10 + $0x170] sm:$0xff]
    %v875 = vld [vmem:[#allocation10 + $0x178] sm:$0xff]
    %v876 = vld [vmem:[#allocation10 + $0x180] sm:$0xff]
    %v877 = vld [vmem:[#allocation10 + $0x188] sm:$0xff]
    %v878 = vld [vmem:[#allocation10 + $0x190] sm:$0xff]
    %v879 = vld [vmem:[#allocation10 + $0x198] sm:$0xff]
    %v880 = vld [vmem:[#allocation10 + $0x1a0] sm:$0xff]
    %v881 = vld [vmem:[#allocation10 + $0x1a8] sm:$0xff]
    %v882 = vld [vmem:[#allocation10 + $0x1b0] sm:$0xff]
    %v883 = vld [vmem:[#allocation10 + $0x1b8] sm:$0xff]
    %v884 = vld [vmem:[#allocation10 + $0x1c0] sm:$0xff]
    %v885 = vld [vmem:[#allocation10 + $0x1c8] sm:$0xff]
    %v886 = vld [vmem:[#allocation10 + $0x1d0] sm:$0xff]
    %v887 = vld [vmem:[#allocation10 + $0x1d8] sm:$0xff]
    %v888 = vld [vmem:[#allocation10 + $0x1e0] sm:$0xff]
    %v889 = vld [vmem:[#allocation10 + $0x1e8] sm:$0xff]
    %v890 = vld [vmem:[#allocation10 + $0x1f0] sm:$0xff]
    %v891 = vld [vmem:[#allocation10 + $0x1f8] sm:$0xff]
    %v892 = vld [vmem:[#allocation10 + $0x200] sm:$0xff]
    %v893 = vld [vmem:[#allocation10 + $0x208] sm:$0xff]
    %v894 = vld [vmem:[#allocation10 + $0x210] sm:$0xff]
    %v895 = vld [vmem:[#allocation10 + $0x218] sm:$0xff]
    %v896 = vld [vmem:[#allocation10 + $0x220] sm:$0xff]
    %v897 = vld [vmem:[#allocation10 + $0x228] sm:$0xff]
    %v898 = vld [vmem:[#allocation10 + $0x230] sm:$0xff]
    %v899 = vld [vmem:[#allocation10 + $0x238] sm:$0xff]
    %v900 = vld [vmem:[#allocation10 + $0x240] sm:$0xff]
    %v901 = vld [vmem:[#allocation10 + $0x248] sm:$0xff]
    %v902 = vld [vmem:[#allocation10 + $0x250] sm:$0xff]
    %v903 = vld [vmem:[#allocation10 + $0x258] sm:$0xff]
    %v904 = vld [vmem:[#allocation10 + $0x260] sm:$0xff]
    %v905 = vld [vmem:[#allocation10 + $0x268] sm:$0xff]
    %v906 = vld [vmem:[#allocation10 + $0x270] sm:$0xff]
    %v907 = vld [vmem:[#allocation10 + $0x278] sm:$0xff]
    %v908 = vld [vmem:[#allocation10 + $0x280] sm:$0xff]
    %v909 = vld [vmem:[#allocation10 + $0x288] sm:$0xff]
    %v910 = vld [vmem:[#allocation10 + $0x290] sm:$0xff]
    %v911 = vld [vmem:[#allocation10 + $0x298] sm:$0xff]
    %v912 = vld [vmem:[#allocation10 + $0x2a0] sm:$0xff]
    %v913 = vld [vmem:[#allocation10 + $0x2a8] sm:$0xff]
    %v914 = vld [vmem:[#allocation10 + $0x2b0] sm:$0xff]
    %v915 = vld [vmem:[#allocation10 + $0x2b8] sm:$0xff]
    %v916 = vld [vmem:[#allocation10 + $0x2c0] sm:$0xff]
    %v917 = vld [vmem:[#allocation10 + $0x2c8] sm:$0xff]
    %v918 = vld [vmem:[#allocation10 + $0x2d0] sm:$0xff]
    %v919 = vld [vmem:[#allocation10 + $0x2d8] sm:$0xff]
    %v920 = vld [vmem:[#allocation10 + $0x2e0] sm:$0xff]
    %v921 = vld [vmem:[#allocation10 + $0x2e8] sm:$0xff]
    %v922 = vld [vmem:[#allocation10 + $0x2f0] sm:$0xff]
    %v923 = vld [vmem:[#allocation10 + $0x2f8] sm:$0xff]
    %v924 = vld [vmem:[#allocation10 + $0x300] sm:$0xff]
    %v925 = vld [vmem:[#allocation10 + $0x308] sm:$0xff]
    %v926 = vld [vmem:[#allocation10 + $0x310] sm:$0xff]
    %v927 = vld [vmem:[#allocation10 + $0x318] sm:$0xff]
    %v928 = vld [vmem:[#allocation10 + $0x320] sm:$0xff]
    %v929 = vld [vmem:[#allocation10 + $0x328] sm:$0xff]
    %v930 = vld [vmem:[#allocation10 + $0x330] sm:$0xff]
    %v931 = vld [vmem:[#allocation10 + $0x338] sm:$0xff]
    %v932 = vld [vmem:[#allocation10 + $0x340] sm:$0xff]
    %v933 = vld [vmem:[#allocation10 + $0x348] sm:$0xff]
    %v934 = vld [vmem:[#allocation10 + $0x350] sm:$0xff]
    %v935 = vld [vmem:[#allocation10 + $0x358] sm:$0xff]
    %v936 = vld [vmem:[#allocation10 + $0x360] sm:$0xff]
    %v937 = vld [vmem:[#allocation10 + $0x368] sm:$0xff]
    %v938 = vld [vmem:[#allocation10 + $0x370] sm:$0xff]
    %v939 = vld [vmem:[#allocation10 + $0x378] sm:$0xff]
    %v940 = vld [vmem:[#allocation10 + $0x380] sm:$0xff]
    %v941 = vld [vmem:[#allocation10 + $0x388] sm:$0xff]
    %v942 = vld [vmem:[#allocation10 + $0x390] sm:$0xff]
    %v943 = vld [vmem:[#allocation10 + $0x398] sm:$0xff]
    %v944 = vld [vmem:[#allocation10 + $0x3a0] sm:$0xff]
    %v945 = vld [vmem:[#allocation10 + $0x3a8] sm:$0xff]
    %v946 = vld [vmem:[#allocation10 + $0x3b0] sm:$0xff]
    %v947 = vld [vmem:[#allocation10 + $0x3b8] sm:$0xff]
    %v948 = vld [vmem:[#allocation10 + $0x3c0] sm:$0xff]
    %v949 = vld [vmem:[#allocation10 + $0x3c8] sm:$0xff]
    %v950 = vld [vmem:[#allocation10 + $0x3d0] sm:$0xff]
    %v951 = vld [vmem:[#allocation10 + $0x3d8] sm:$0xff]
    %v952 = vld [vmem:[#allocation10 + $0x3e0] sm:$0xff]
    %v953 = vld [vmem:[#allocation10 + $0x3e8] sm:$0xff]
    %v954 = vld [vmem:[#allocation10 + $0x3f0] sm:$0xff]
    %v955 = vld [vmem:[#allocation10 + $0x3f8] sm:$0xff]
    %v1084 = vunpack.c.l.b16 %v828
    %v1085 = vunpack.c.h.b16 %v828
    %v1086 = vunpack.c.l.b16 %v829
    %v1087 = vunpack.c.h.b16 %v829
    %v1088 = vunpack.c.l.b16 %v830
    %v1089 = vunpack.c.h.b16 %v830
    %v1090 = vunpack.c.l.b16 %v831
    %v1091 = vunpack.c.h.b16 %v831
    %v1092 = vunpack.c.l.b16 %v832
    %v1093 = vunpack.c.h.b16 %v832
    %v1094 = vunpack.c.l.b16 %v833
    %v1095 = vunpack.c.h.b16 %v833
    %v1096 = vunpack.c.l.b16 %v834
    %v1097 = vunpack.c.h.b16 %v834
    %v1098 = vunpack.c.l.b16 %v835
    %v1099 = vunpack.c.h.b16 %v835
    %v1100 = vunpack.c.l.b16 %v836
    %v1101 = vunpack.c.h.b16 %v836
    %v1102 = vunpack.c.l.b16 %v837
    %v1103 = vunpack.c.h.b16 %v837
    %v1104 = vunpack.c.l.b16 %v838
    %v1105 = vunpack.c.h.b16 %v838
    %v1106 = vunpack.c.l.b16 %v839
    %v1107 = vunpack.c.h.b16 %v839
    %v1108 = vunpack.c.l.b16 %v840
    %v1109 = vunpack.c.h.b16 %v840
    %v1110 = vunpack.c.l.b16 %v841
    %v1111 = vunpack.c.h.b16 %v841
    %v1112 = vunpack.c.l.b16 %v842
    %v1113 = vunpack.c.h.b16 %v842
    %v1114 = vunpack.c.l.b16 %v843
    %v1115 = vunpack.c.h.b16 %v843
    %v1116 = vunpack.c.l.b16 %v844
    %v1117 = vunpack.c.h.b16 %v844
    %v1118 = vunpack.c.l.b16 %v845
    %v1119 = vunpack.c.h.b16 %v845
    %v1120 = vunpack.c.l.b16 %v846
    %v1121 = vunpack.c.h.b16 %v846
    %v1122 = vunpack.c.l.b16 %v847
    %v1123 = vunpack.c.h.b16 %v847
    %v1124 = vunpack.c.l.b16 %v848
    %v1125 = vunpack.c.h.b16 %v848
    %v1126 = vunpack.c.l.b16 %v849
    %v1127 = vunpack.c.h.b16 %v849
    %v1128 = vunpack.c.l.b16 %v850
    %v1129 = vunpack.c.h.b16 %v850
    %v1130 = vunpack.c.l.b16 %v851
    %v1131 = vunpack.c.h.b16 %v851
    %v1132 = vunpack.c.l.b16 %v852
    %v1133 = vunpack.c.h.b16 %v852
    %v1134 = vunpack.c.l.b16 %v853
    %v1135 = vunpack.c.h.b16 %v853
    %v1136 = vunpack.c.l.b16 %v854
    %v1137 = vunpack.c.h.b16 %v854
    %v1138 = vunpack.c.l.b16 %v855
    %v1139 = vunpack.c.h.b16 %v855
    %v1140 = vunpack.c.l.b16 %v856
    %v1141 = vunpack.c.h.b16 %v856
    %v1142 = vunpack.c.l.b16 %v857
    %v1143 = vunpack.c.h.b16 %v857
    %v1144 = vunpack.c.l.b16 %v858
    %v1145 = vunpack.c.h.b16 %v858
    %v1146 = vunpack.c.l.b16 %v859
    %v1147 = vunpack.c.h.b16 %v859
    %v1148 = vunpack.c.l.b16 %v860
    %v1149 = vunpack.c.h.b16 %v860
    %v1150 = vunpack.c.l.b16 %v861
    %v1151 = vunpack.c.h.b16 %v861
    %v1152 = vunpack.c.l.b16 %v862
    %v1153 = vunpack.c.h.b16 %v862
    %v1154 = vunpack.c.l.b16 %v863
    %v1155 = vunpack.c.h.b16 %v863
    %v1156 = vunpack.c.l.b16 %v864
    %v1157 = vunpack.c.h.b16 %v864
    %v1158 = vunpack.c.l.b16 %v865
    %v1159 = vunpack.c.h.b16 %v865
    %v1160 = vunpack.c.l.b16 %v866
    %v1161 = vunpack.c.h.b16 %v866
    %v1162 = vunpack.c.l.b16 %v867
    %v1163 = vunpack.c.h.b16 %v867
    %v1164 = vunpack.c.l.b16 %v868
    %v1165 = vunpack.c.h.b16 %v868
    %v1166 = vunpack.c.l.b16 %v869
    %v1167 = vunpack.c.h.b16 %v869
    %v1168 = vunpack.c.l.b16 %v870
    %v1169 = vunpack.c.h.b16 %v870
    %v1170 = vunpack.c.l.b16 %v871
    %v1171 = vunpack.c.h.b16 %v871
    %v1172 = vunpack.c.l.b16 %v872
    %v1173 = vunpack.c.h.b16 %v872
    %v1174 = vunpack.c.l.b16 %v873
    %v1175 = vunpack.c.h.b16 %v873
    %v1176 = vunpack.c.l.b16 %v874
    %v1177 = vunpack.c.h.b16 %v874
    %v1178 = vunpack.c.l.b16 %v875
    %v1179 = vunpack.c.h.b16 %v875
    %v1180 = vunpack.c.l.b16 %v876
    %v1181 = vunpack.c.h.b16 %v876
    %v1182 = vunpack.c.l.b16 %v877
    %v1183 = vunpack.c.h.b16 %v877
    %v1184 = vunpack.c.l.b16 %v878
    %v1185 = vunpack.c.h.b16 %v878
    %v1186 = vunpack.c.l.b16 %v879
    %v1187 = vunpack.c.h.b16 %v879
    %v1188 = vunpack.c.l.b16 %v880
    %v1189 = vunpack.c.h.b16 %v880
    %v1190 = vunpack.c.l.b16 %v881
    %v1191 = vunpack.c.h.b16 %v881
    %v1192 = vunpack.c.l.b16 %v882
    %v1193 = vunpack.c.h.b16 %v882
    %v1194 = vunpack.c.l.b16 %v883
    %v1195 = vunpack.c.h.b16 %v883
    %v1196 = vunpack.c.l.b16 %v884
    %v1197 = vunpack.c.h.b16 %v884
    %v1198 = vunpack.c.l.b16 %v885
    %v1199 = vunpack.c.h.b16 %v885
    %v1200 = vunpack.c.l.b16 %v886
    %v1201 = vunpack.c.h.b16 %v886
    %v1202 = vunpack.c.l.b16 %v887
    %v1203 = vunpack.c.h.b16 %v887
    %v1204 = vunpack.c.l.b16 %v888
    %v1205 = vunpack.c.h.b16 %v888
    %v1206 = vunpack.c.l.b16 %v889
    %v1207 = vunpack.c.h.b16 %v889
    %v1208 = vunpack.c.l.b16 %v890
    %v1209 = vunpack.c.h.b16 %v890
    %v1210 = vunpack.c.l.b16 %v891
    %v1211 = vunpack.c.h.b16 %v891
    %v1212 = vunpack.c.l.b16 %v892
    %v1213 = vunpack.c.h.b16 %v892
    %v1214 = vunpack.c.l.b16 %v893
    %v1215 = vunpack.c.h.b16 %v893
    %v1216 = vunpack.c.l.b16 %v894
    %v1217 = vunpack.c.h.b16 %v894
    %v1218 = vunpack.c.l.b16 %v895
    %v1219 = vunpack.c.h.b16 %v895
    %v1220 = vunpack.c.l.b16 %v896
    %v1221 = vunpack.c.h.b16 %v896
    %v1222 = vunpack.c.l.b16 %v897
    %v1223 = vunpack.c.h.b16 %v897
    %v1224 = vunpack.c.l.b16 %v898
    %v1225 = vunpack.c.h.b16 %v898
    %v1226 = vunpack.c.l.b16 %v899
    %v1227 = vunpack.c.h.b16 %v899
    %v1228 = vunpack.c.l.b16 %v900
    %v1229 = vunpack.c.h.b16 %v900
    %v1230 = vunpack.c.l.b16 %v901
    %v1231 = vunpack.c.h.b16 %v901
    %v1232 = vunpack.c.l.b16 %v902
    %v1233 = vunpack.c.h.b16 %v902
    %v1234 = vunpack.c.l.b16 %v903
    %v1235 = vunpack.c.h.b16 %v903
    %v1236 = vunpack.c.l.b16 %v904
    %v1237 = vunpack.c.h.b16 %v904
    %v1238 = vunpack.c.l.b16 %v905
    %v1239 = vunpack.c.h.b16 %v905
    %v1240 = vunpack.c.l.b16 %v906
    %v1241 = vunpack.c.h.b16 %v906
    %v1242 = vunpack.c.l.b16 %v907
    %v1243 = vunpack.c.h.b16 %v907
    %v1244 = vunpack.c.l.b16 %v908
    %v1245 = vunpack.c.h.b16 %v908
    %v1246 = vunpack.c.l.b16 %v909
    %v1247 = vunpack.c.h.b16 %v909
    %v1248 = vunpack.c.l.b16 %v910
    %v1249 = vunpack.c.h.b16 %v910
    %v1250 = vunpack.c.l.b16 %v911
    %v1251 = vunpack.c.h.b16 %v911
    %v1252 = vunpack.c.l.b16 %v912
    %v1253 = vunpack.c.h.b16 %v912
    %v1254 = vunpack.c.l.b16 %v913
    %v1255 = vunpack.c.h.b16 %v913
    %v1256 = vunpack.c.l.b16 %v914
    %v1257 = vunpack.c.h.b16 %v914
    %v1258 = vunpack.c.l.b16 %v915
    %v1259 = vunpack.c.h.b16 %v915
    %v1260 = vunpack.c.l.b16 %v916
    %v1261 = vunpack.c.h.b16 %v916
    %v1262 = vunpack.c.l.b16 %v917
    %v1263 = vunpack.c.h.b16 %v917
    %v1264 = vunpack.c.l.b16 %v918
    %v1265 = vunpack.c.h.b16 %v918
    %v1266 = vunpack.c.l.b16 %v919
    %v1267 = vunpack.c.h.b16 %v919
    %v1268 = vunpack.c.l.b16 %v920
    %v1269 = vunpack.c.h.b16 %v920
    %v1270 = vunpack.c.l.b16 %v921
    %v1271 = vunpack.c.h.b16 %v921
    %v1272 = vunpack.c.l.b16 %v922
    %v1273 = vunpack.c.h.b16 %v922
    %v1274 = vunpack.c.l.b16 %v923
    %v1275 = vunpack.c.h.b16 %v923
    %v1276 = vunpack.c.l.b16 %v924
    %v1277 = vunpack.c.h.b16 %v924
    %v1278 = vunpack.c.l.b16 %v925
    %v1279 = vunpack.c.h.b16 %v925
    %v1280 = vunpack.c.l.b16 %v926
    %v1281 = vunpack.c.h.b16 %v926
    %v1282 = vunpack.c.l.b16 %v927
    %v1283 = vunpack.c.h.b16 %v927
    %v1284 = vunpack.c.l.b16 %v928
    %v1285 = vunpack.c.h.b16 %v928
    %v1286 = vunpack.c.l.b16 %v929
    %v1287 = vunpack.c.h.b16 %v929
    %v1288 = vunpack.c.l.b16 %v930
    %v1289 = vunpack.c.h.b16 %v930
    %v1290 = vunpack.c.l.b16 %v931
    %v1291 = vunpack.c.h.b16 %v931
    %v1292 = vunpack.c.l.b16 %v932
    %v1293 = vunpack.c.h.b16 %v932
    %v1294 = vunpack.c.l.b16 %v933
    %v1295 = vunpack.c.h.b16 %v933
    %v1296 = vunpack.c.l.b16 %v934
    %v1297 = vunpack.c.h.b16 %v934
    %v1298 = vunpack.c.l.b16 %v935
    %v1299 = vunpack.c.h.b16 %v935
    %v1300 = vunpack.c.l.b16 %v936
    %v1301 = vunpack.c.h.b16 %v936
    %v1302 = vunpack.c.l.b16 %v937
    %v1303 = vunpack.c.h.b16 %v937
    %v1304 = vunpack.c.l.b16 %v938
    %v1305 = vunpack.c.h.b16 %v938
    %v1306 = vunpack.c.l.b16 %v939
    %v1307 = vunpack.c.h.b16 %v939
    %v1308 = vunpack.c.l.b16 %v940
    %v1309 = vunpack.c.h.b16 %v940
    %v1310 = vunpack.c.l.b16 %v941
    %v1311 = vunpack.c.h.b16 %v941
    %v1312 = vunpack.c.l.b16 %v942
    %v1313 = vunpack.c.h.b16 %v942
    %v1314 = vunpack.c.l.b16 %v943
    %v1315 = vunpack.c.h.b16 %v943
    %v1316 = vunpack.c.l.b16 %v944
    %v1317 = vunpack.c.h.b16 %v944
    %v1318 = vunpack.c.l.b16 %v945
    %v1319 = vunpack.c.h.b16 %v945
    %v1320 = vunpack.c.l.b16 %v946
    %v1321 = vunpack.c.h.b16 %v946
    %v1322 = vunpack.c.l.b16 %v947
    %v1323 = vunpack.c.h.b16 %v947
    %v1324 = vunpack.c.l.b16 %v948
    %v1325 = vunpack.c.h.b16 %v948
    %v1326 = vunpack.c.l.b16 %v949
    %v1327 = vunpack.c.h.b16 %v949
    %v1328 = vunpack.c.l.b16 %v950
    %v1329 = vunpack.c.h.b16 %v950
    %v1330 = vunpack.c.l.b16 %v951
    %v1331 = vunpack.c.h.b16 %v951
    %v1332 = vunpack.c.l.b16 %v952
    %v1333 = vunpack.c.h.b16 %v952
    %v1334 = vunpack.c.l.b16 %v953
    %v1335 = vunpack.c.h.b16 %v953
    %v1336 = vunpack.c.l.b16 %v954
    %v1337 = vunpack.c.h.b16 %v954
    %v1338 = vunpack.c.l.b16 %v955
    %v1339 = vunpack.c.h.b16 %v955
    %v1340 = vpack.c.b16 %v1088, %v1084
    %v1341 = vpack.c.b16 %v1089, %v1085
    %v1342 = vpack.c.b16 %v1090, %v1086
    %v1343 = vpack.c.b16 %v1091, %v1087
    %v1344 = vpack.c.b16 %v1096, %v1092
    %v1345 = vpack.c.b16 %v1097, %v1093
    %v1346 = vpack.c.b16 %v1098, %v1094
    %v1347 = vpack.c.b16 %v1099, %v1095
    %v1348 = vpack.c.b16 %v1104, %v1100
    %v1349 = vpack.c.b16 %v1105, %v1101
    %v1350 = vpack.c.b16 %v1106, %v1102
    %v1351 = vpack.c.b16 %v1107, %v1103
    %v1352 = vpack.c.b16 %v1112, %v1108
    %v1353 = vpack.c.b16 %v1113, %v1109
    %v1354 = vpack.c.b16 %v1114, %v1110
    %v1355 = vpack.c.b16 %v1115, %v1111
    %v1356 = vpack.c.b16 %v1120, %v1116
    %v1357 = vpack.c.b16 %v1121, %v1117
    %v1358 = vpack.c.b16 %v1122, %v1118
    %v1359 = vpack.c.b16 %v1123, %v1119
    %v1360 = vpack.c.b16 %v1128, %v1124
    %v1361 = vpack.c.b16 %v1129, %v1125
    %v1362 = vpack.c.b16 %v1130, %v1126
    %v1363 = vpack.c.b16 %v1131, %v1127
    %v1364 = vpack.c.b16 %v1136, %v1132
    %v1365 = vpack.c.b16 %v1137, %v1133
    %v1366 = vpack.c.b16 %v1138, %v1134
    %v1367 = vpack.c.b16 %v1139, %v1135
    %v1368 = vpack.c.b16 %v1144, %v1140
    %v1369 = vpack.c.b16 %v1145, %v1141
    %v1370 = vpack.c.b16 %v1146, %v1142
    %v1371 = vpack.c.b16 %v1147, %v1143
    %v1372 = vpack.c.b16 %v1152, %v1148
    %v1373 = vpack.c.b16 %v1153, %v1149
    %v1374 = vpack.c.b16 %v1154, %v1150
    %v1375 = vpack.c.b16 %v1155, %v1151
    %v1376 = vpack.c.b16 %v1160, %v1156
    %v1377 = vpack.c.b16 %v1161, %v1157
    %v1378 = vpack.c.b16 %v1162, %v1158
    %v1379 = vpack.c.b16 %v1163, %v1159
    %v1380 = vpack.c.b16 %v1168, %v1164
    %v1381 = vpack.c.b16 %v1169, %v1165
    %v1382 = vpack.c.b16 %v1170, %v1166
    %v1383 = vpack.c.b16 %v1171, %v1167
    %v1384 = vpack.c.b16 %v1176, %v1172
    %v1385 = vpack.c.b16 %v1177, %v1173
    %v1386 = vpack.c.b16 %v1178, %v1174
    %v1387 = vpack.c.b16 %v1179, %v1175
    %v1388 = vpack.c.b16 %v1184, %v1180
    %v1389 = vpack.c.b16 %v1185, %v1181
    %v1390 = vpack.c.b16 %v1186, %v1182
    %v1391 = vpack.c.b16 %v1187, %v1183
    %v1392 = vpack.c.b16 %v1192, %v1188
    %v1393 = vpack.c.b16 %v1193, %v1189
    %v1394 = vpack.c.b16 %v1194, %v1190
    %v1395 = vpack.c.b16 %v1195, %v1191
    %v1396 = vpack.c.b16 %v1200, %v1196
    %v1397 = vpack.c.b16 %v1201, %v1197
    %v1398 = vpack.c.b16 %v1202, %v1198
    %v1399 = vpack.c.b16 %v1203, %v1199
    %v1400 = vpack.c.b16 %v1208, %v1204
    %v1401 = vpack.c.b16 %v1209, %v1205
    %v1402 = vpack.c.b16 %v1210, %v1206
    %v1403 = vpack.c.b16 %v1211, %v1207
    %v1404 = vpack.c.b16 %v1216, %v1212
    %v1405 = vpack.c.b16 %v1217, %v1213
    %v1406 = vpack.c.b16 %v1218, %v1214
    %v1407 = vpack.c.b16 %v1219, %v1215
    %v1408 = vpack.c.b16 %v1224, %v1220
    %v1409 = vpack.c.b16 %v1225, %v1221
    %v1410 = vpack.c.b16 %v1226, %v1222
    %v1411 = vpack.c.b16 %v1227, %v1223
    %v1412 = vpack.c.b16 %v1232, %v1228
    %v1413 = vpack.c.b16 %v1233, %v1229
    %v1414 = vpack.c.b16 %v1234, %v1230
    %v1415 = vpack.c.b16 %v1235, %v1231
    %v1416 = vpack.c.b16 %v1240, %v1236
    %v1417 = vpack.c.b16 %v1241, %v1237
    %v1418 = vpack.c.b16 %v1242, %v1238
    %v1419 = vpack.c.b16 %v1243, %v1239
    %v1420 = vpack.c.b16 %v1248, %v1244
    %v1421 = vpack.c.b16 %v1249, %v1245
    %v1422 = vpack.c.b16 %v1250, %v1246
    %v1423 = vpack.c.b16 %v1251, %v1247
    %v1424 = vpack.c.b16 %v1256, %v1252
    %v1425 = vpack.c.b16 %v1257, %v1253
    %v1426 = vpack.c.b16 %v1258, %v1254
    %v1427 = vpack.c.b16 %v1259, %v1255
    %v1428 = vpack.c.b16 %v1264, %v1260
    %v1429 = vpack.c.b16 %v1265, %v1261
    %v1430 = vpack.c.b16 %v1266, %v1262
    %v1431 = vpack.c.b16 %v1267, %v1263
    %v1432 = vpack.c.b16 %v1272, %v1268
    %v1433 = vpack.c.b16 %v1273, %v1269
    %v1434 = vpack.c.b16 %v1274, %v1270
    %v1435 = vpack.c.b16 %v1275, %v1271
    %v1436 = vpack.c.b16 %v1280, %v1276
    %v1437 = vpack.c.b16 %v1281, %v1277
    %v1438 = vpack.c.b16 %v1282, %v1278
    %v1439 = vpack.c.b16 %v1283, %v1279
    %v1440 = vpack.c.b16 %v1288, %v1284
    %v1441 = vpack.c.b16 %v1289, %v1285
    %v1442 = vpack.c.b16 %v1290, %v1286
    %v1443 = vpack.c.b16 %v1291, %v1287
    %v1444 = vpack.c.b16 %v1296, %v1292
    %v1445 = vpack.c.b16 %v1297, %v1293
    %v1446 = vpack.c.b16 %v1298, %v1294
    %v1447 = vpack.c.b16 %v1299, %v1295
    %v1448 = vpack.c.b16 %v1304, %v1300
    %v1449 = vpack.c.b16 %v1305, %v1301
    %v1450 = vpack.c.b16 %v1306, %v1302
    %v1451 = vpack.c.b16 %v1307, %v1303
    %v1452 = vpack.c.b16 %v1312, %v1308
    %v1453 = vpack.c.b16 %v1313, %v1309
    %v1454 = vpack.c.b16 %v1314, %v1310
    %v1455 = vpack.c.b16 %v1315, %v1311
    %v1456 = vpack.c.b16 %v1320, %v1316
    %v1457 = vpack.c.b16 %v1321, %v1317
    %v1458 = vpack.c.b16 %v1322, %v1318
    %v1459 = vpack.c.b16 %v1323, %v1319
    %v1460 = vpack.c.b16 %v1328, %v1324
    %v1461 = vpack.c.b16 %v1329, %v1325
    %v1462 = vpack.c.b16 %v1330, %v1326
    %v1463 = vpack.c.b16 %v1331, %v1327
    %v1464 = vpack.c.b16 %v1336, %v1332
    %v1465 = vpack.c.b16 %v1337, %v1333
    %v1466 = vpack.c.b16 %v1338, %v1334
    %v1467 = vpack.c.b16 %v1339, %v1335
    %1596 = vmatprep.subr.bf16.mxu0 %v1369
    %1597 = vmatpush1.bf16.msra.mxu0 %v1368
    %1598 = vmatprep.subr.bf16.mxu0 %v1365
    %1599 = vmatpush1.bf16.msra.mxu0 %v1364
    %1600 = vmatprep.subr.bf16.mxu0 %v1361
    %1601 = vmatpush1.bf16.msra.mxu0 %v1360
    %1602 = vmatprep.subr.bf16.mxu0 %v1357
    %1603 = vmatpush1.bf16.msra.mxu0 %v1356
    %1604 = vmatprep.subr.bf16.mxu0 %v1353
    %1605 = vmatpush1.bf16.msra.mxu0 %v1352
    %1606 = vmatprep.subr.bf16.mxu0 %v1349
    %1607 = vmatpush1.bf16.msra.mxu0 %v1348
    %1608 = vmatprep.subr.bf16.mxu0 %v1345
    %1609 = vmatpush1.bf16.msra.mxu0 %v1344
    %1610 = vmatprep.subr.bf16.mxu0 %v1341
    %1611 = vmatpush1.bf16.msra.mxu0 %v1340
    %1612 = vmatprep.subr.bf16.mxu0 %v1401
    %1613 = vmatpush2.bf16.msra.mxu0 %v1400
    %1614 = vmatprep.subr.bf16.mxu0 %v1397
    %1615 = vmatpush2.bf16.msra.mxu0 %v1396
    %1616 = vmatprep.subr.bf16.mxu0 %v1393
    %1617 = vmatpush2.bf16.msra.mxu0 %v1392
    %1618 = vmatprep.subr.bf16.mxu0 %v1389
    %1619 = vmatpush2.bf16.msra.mxu0 %v1388
    %1620 = vmatprep.subr.bf16.mxu0 %v1385
    %1621 = vmatpush2.bf16.msra.mxu0 %v1384
    %1622 = vmatprep.subr.bf16.mxu0 %v1381
    %1623 = vmatpush2.bf16.msra.mxu0 %v1380
    %1624 = vmatprep.subr.bf16.mxu0 %v1377
    %1625 = vmatpush2.bf16.msra.mxu0 %v1376
    %1626 = vmatprep.subr.bf16.mxu0 %v1373
    %1627 = vmatpush2.bf16.msra.mxu0 %v1372
    %1628 = vmatprep.mubr.bf16.mxu0 %v825
    %1629 = vmatmul.mubr.bf16.gmra.mxu0 %v824
    %v1630 = vpop.f32.mrf.mxu0
    %v1631 = vadd.f32 0.0, %v1630
    %v1632 = vpop.f32.mrf.mxu0
    %v1633 = vadd.f32 0.0, %v1632
    %v1634 = vpop.f32.mrf.mxu0
    %v1635 = vadd.f32 0.0, %v1634
    %v1636 = vpop.f32.mrf.mxu0
    %v1637 = vadd.f32 0.0, %v1636
    %1638 = vdwg.mxu0
    %1639 = vmatprep.subr.bf16.mxu0 %v1433
    %1640 = vmatpush1.bf16.msra.mxu0 %v1432
    %1641 = vmatprep.subr.bf16.mxu0 %v1429
    %1642 = vmatpush1.bf16.msra.mxu0 %v1428
    %1643 = vmatprep.subr.bf16.mxu0 %v1425
    %1644 = vmatpush1.bf16.msra.mxu0 %v1424
    %1645 = vmatprep.subr.bf16.mxu0 %v1421
    %1646 = vmatpush1.bf16.msra.mxu0 %v1420
    %1647 = vmatprep.subr.bf16.mxu0 %v1417
    %1648 = vmatpush1.bf16.msra.mxu0 %v1416
    %1649 = vmatprep.subr.bf16.mxu0 %v1413
    %1650 = vmatpush1.bf16.msra.mxu0 %v1412
    %1651 = vmatprep.subr.bf16.mxu0 %v1409
    %1652 = vmatpush1.bf16.msra.mxu0 %v1408
    %1653 = vmatprep.subr.bf16.mxu0 %v1405
    %1654 = vmatpush1.bf16.msra.mxu0 %v1404
    %1655 = vmatprep.subr.bf16.mxu0 %v1465
    %1656 = vmatpush2.bf16.msra.mxu0 %v1464
    %1657 = vmatprep.subr.bf16.mxu0 %v1461
    %1658 = vmatpush2.bf16.msra.mxu0 %v1460
    %1659 = vmatprep.subr.bf16.mxu0 %v1457
    %1660 = vmatpush2.bf16.msra.mxu0 %v1456
    %1661 = vmatprep.subr.bf16.mxu0 %v1453
    %1662 = vmatpush2.bf16.msra.mxu0 %v1452
    %1663 = vmatprep.subr.bf16.mxu0 %v1449
    %1664 = vmatpush2.bf16.msra.mxu0 %v1448
    %1665 = vmatprep.subr.bf16.mxu0 %v1445
    %1666 = vmatpush2.bf16.msra.mxu0 %v1444
    %1667 = vmatprep.subr.bf16.mxu0 %v1441
    %1668 = vmatpush2.bf16.msra.mxu0 %v1440
    %1669 = vmatprep.subr.bf16.mxu0 %v1437
    %1670 = vmatpush2.bf16.msra.mxu0 %v1436
    %1671 = vmatprep.mubr.bf16.mxu0 %v827
    %1672 = vmatmul.mubr.bf16.gmra.mxu0 %v826
    %v1673 = vpop.f32.mrf.mxu0
    %v1674 = vadd.f32 %v1631, %v1673
    %v1675 = vpop.f32.mrf.mxu0
    %v1676 = vadd.f32 %v1633, %v1675
    %v1677 = vpop.f32.mrf.mxu0
    %v1678 = vadd.f32 %v1635, %v1677
    %v1679 = vpop.f32.mrf.mxu0
    %v1680 = vadd.f32 %v1637, %v1679
    %1681 = vdwg.mxu0
    %1682 = vmatprep.subr.bf16.mxu0 %v1371
    %1683 = vmatpush1.bf16.msra.mxu0 %v1370
    %1684 = vmatprep.subr.bf16.mxu0 %v1367
    %1685 = vmatpush1.bf16.msra.mxu0 %v1366
    %1686 = vmatprep.subr.bf16.mxu0 %v1363
    %1687 = vmatpush1.bf16.msra.mxu0 %v1362
    %1688 = vmatprep.subr.bf16.mxu0 %v1359
    %1689 = vmatpush1.bf16.msra.mxu0 %v1358
    %1690 = vmatprep.subr.bf16.mxu0 %v1355
    %1691 = vmatpush1.bf16.msra.mxu0 %v1354
    %1692 = vmatprep.subr.bf16.mxu0 %v1351
    %1693 = vmatpush1.bf16.msra.mxu0 %v1350
    %1694 = vmatprep.subr.bf16.mxu0 %v1347
    %1695 = vmatpush1.bf16.msra.mxu0 %v1346
    %1696 = vmatprep.subr.bf16.mxu0 %v1343
    %1697 = vmatpush1.bf16.msra.mxu0 %v1342
    %1698 = vmatprep.subr.bf16.mxu0 %v1403
    %1699 = vmatpush2.bf16.msra.mxu0 %v1402
    %1700 = vmatprep.subr.bf16.mxu0 %v1399
    %1701 = vmatpush2.bf16.msra.mxu0 %v1398
    %1702 = vmatprep.subr.bf16.mxu0 %v1395
    %1703 = vmatpush2.bf16.msra.mxu0 %v1394
    %1704 = vmatprep.subr.bf16.mxu0 %v1391
    %1705 = vmatpush2.bf16.msra.mxu0 %v1390
    %1706 = vmatprep.subr.bf16.mxu0 %v1387
    %1707 = vmatpush2.bf16.msra.mxu0 %v1386
    %1708 = vmatprep.subr.bf16.mxu0 %v1383
    %1709 = vmatpush2.bf16.msra.mxu0 %v1382
    %1710 = vmatprep.subr.bf16.mxu0 %v1379
    %1711 = vmatpush2.bf16.msra.mxu0 %v1378
    %1712 = vmatprep.subr.bf16.mxu0 %v1375
    %1713 = vmatpush2.bf16.msra.mxu0 %v1374
    %1714 = vmatprep.mubr.bf16.mxu0 %v825
    %1715 = vmatmul.mubr.bf16.gmra.mxu0 %v824
    %v1716 = vpop.f32.mrf.mxu0
    %v1717 = vadd.f32 0.0, %v1716
    %v1718 = vpop.f32.mrf.mxu0
    %v1719 = vadd.f32 0.0, %v1718
    %v1720 = vpop.f32.mrf.mxu0
    %v1721 = vadd.f32 0.0, %v1720
    %v1722 = vpop.f32.mrf.mxu0
    %v1723 = vadd.f32 0.0, %v1722
    %1724 = vdwg.mxu0
    %1725 = vmatprep.subr.bf16.mxu0 %v1435
    %1726 = vmatpush1.bf16.msra.mxu0 %v1434
    %1727 = vmatprep.subr.bf16.mxu0 %v1431
    %1728 = vmatpush1.bf16.msra.mxu0 %v1430
    %1729 = vmatprep.subr.bf16.mxu0 %v1427
    %1730 = vmatpush1.bf16.msra.mxu0 %v1426
    %1731 = vmatprep.subr.bf16.mxu0 %v1423
    %1732 = vmatpush1.bf16.msra.mxu0 %v1422
    %1733 = vmatprep.subr.bf16.mxu0 %v1419
    %1734 = vmatpush1.bf16.msra.mxu0 %v1418
    %1735 = vmatprep.subr.bf16.mxu0 %v1415
    %1736 = vmatpush1.bf16.msra.mxu0 %v1414
    %1737 = vmatprep.subr.bf16.mxu0 %v1411
    %1738 = vmatpush1.bf16.msra.mxu0 %v1410
    %1739 = vmatprep.subr.bf16.mxu0 %v1407
    %1740 = vmatpush1.bf16.msra.mxu0 %v1406
    %1741 = vmatprep.subr.bf16.mxu0 %v1467
    %1742 = vmatpush2.bf16.msra.mxu0 %v1466
    %1743 = vmatprep.subr.bf16.mxu0 %v1463
    %1744 = vmatpush2.bf16.msra.mxu0 %v1462
    %1745 = vmatprep.subr.bf16.mxu0 %v1459
    %1746 = vmatpush2.bf16.msra.mxu0 %v1458
    %1747 = vmatprep.subr.bf16.mxu0 %v1455
    %1748 = vmatpush2.bf16.msra.mxu0 %v1454
    %1749 = vmatprep.subr.bf16.mxu0 %v1451
    %1750 = vmatpush2.bf16.msra.mxu0 %v1450
    %1751 = vmatprep.subr.bf16.mxu0 %v1447
    %1752 = vmatpush2.bf16.msra.mxu0 %v1446
    %1753 = vmatprep.subr.bf16.mxu0 %v1443
    %1754 = vmatpush2.bf16.msra.mxu0 %v1442
    %1755 = vmatprep.subr.bf16.mxu0 %v1439
    %1756 = vmatpush2.bf16.msra.mxu0 %v1438
    %1757 = vmatprep.mubr.bf16.mxu0 %v827
    %1758 = vmatmul.mubr.bf16.gmra.mxu0 %v826
    %v1759 = vpop.f32.mrf.mxu0
    %v1760 = vadd.f32 %v1717, %v1759
    %v1761 = vpop.f32.mrf.mxu0
    %v1762 = vadd.f32 %v1719, %v1761
    %v1763 = vpop.f32.mrf.mxu0
    %v1764 = vadd.f32 %v1721, %v1763
    %v1765 = vpop.f32.mrf.mxu0
    %v1766 = vadd.f32 %v1723, %v1765
    %1767 = vdwg.mxu0
    %v1768 = vmul.f32 %v1674, %v822
    %v1769 = vmul.f32 %v1676, %v822
    %v1770 = vmul.f32 %v1760, %v822
    %v1771 = vmul.f32 %v1762, %v822
    %v1772 = vmul.f32 %v1678, %v823
    %v1773 = vmul.f32 %v1680, %v823
    %v1774 = vmul.f32 %v1764, %v823
    %v1775 = vmul.f32 %v1766, %v823
    %v1776 = vld [vmem:[%s6] sm:$0xf]
    %v1778 = vlaneseq
    %v1779 = vshrl.u32 %v1778, 7
    %v1780 = vsub.s32 0, %v1779
    %v1781 = vrot.slane %v1776, %v1780
    %v1782 = vlaneseq
    %v1783 = vshrl.u32 %v1782, 7
    %v1784 = vsub.s32 1, %v1783
    %v1785 = vrot.slane %v1776, %v1784
    %v1786 = vlaneseq
    %v1787 = vshrl.u32 %v1786, 7
    %v1788 = vsub.s32 2, %v1787
    %v1789 = vrot.slane %v1776, %v1788
    %v1790 = vlaneseq
    %v1791 = vshrl.u32 %v1790, 7
    %v1792 = vsub.s32 3, %v1791
    %v1793 = vrot.slane %v1776, %v1792
    %v1798 = vadd.f32 %v1768, %v1781
    %v1799 = vadd.f32 %v1769, %v1785
    %v1800 = vadd.f32 %v1770, %v1789
    %v1801 = vadd.f32 %v1771, %v1793
    %v1802 = vadd.f32 %v1772, %v1781
    %v1803 = vadd.f32 %v1773, %v1785
    %v1804 = vadd.f32 %v1774, %v1789
    %v1805 = vadd.f32 %v1775, %v1793
    %v1806 = vld [vmem:[%s7] sm:$0xf]
    %v1807 = vld [vmem:[#allocation11] sm:$0xf]
    %v1808 = vadd.f32 %v1798, %v1799
    %v1809 = vadd.f32 %v1808, %v1800
    %v1810 = vadd.f32 %v1809, %v1801
    %1811 = vadd.xlane.f32.xlu0 %v1810
    %v1812 = vpop.xlane.xlu0 %1811
    %v1813 = vadd.f32 %v1802, %v1803
    %v1814 = vadd.f32 %v1813, %v1804
    %v1815 = vadd.f32 %v1814, %v1805
    %1816 = vadd.xlane.f32.xlu0 %v1815
    %v1817 = vpop.xlane.xlu0 %1816
    %v1818 = vmul.f32 %v1812, 0.001953125
    %v1819 = vmul.f32 %v1817, 0.001953125
    %v1820 = vmul.f32 %v1798, %v1798
    %v1821 = vmul.f32 %v1799, %v1799
    %v1822 = vmul.f32 %v1800, %v1800
    %v1823 = vmul.f32 %v1801, %v1801
    %v1824 = vmul.f32 %v1802, %v1802
    %v1825 = vmul.f32 %v1803, %v1803
    %v1826 = vmul.f32 %v1804, %v1804
    %v1827 = vmul.f32 %v1805, %v1805
    %v1828 = vadd.f32 %v1820, %v1821
    %v1829 = vadd.f32 %v1828, %v1822
    %v1830 = vadd.f32 %v1829, %v1823
    %1831 = vadd.xlane.f32.xlu0 %v1830
    %v1832 = vpop.xlane.xlu0 %1831
    %v1833 = vadd.f32 %v1824, %v1825
    %v1834 = vadd.f32 %v1833, %v1826
    %v1835 = vadd.f32 %v1834, %v1827
    %1836 = vadd.xlane.f32.xlu0 %v1835
    %v1837 = vpop.xlane.xlu0 %1836
    %v1838 = vmul.f32 %v1832, 0.001953125
    %v1839 = vmul.f32 %v1837, 0.001953125
    %v1840 = vmul.f32 %v1818, %v1818
    %v1841 = vmul.f32 %v1819, %v1819
    %v1842 = vsub.f32 %v1838, %v1840
    %v1843 = vsub.f32 %v1839, %v1841
    %v1844 = vsub.f32 %v1798, %v1818
    %v1845 = vsub.f32 %v1799, %v1818
    %v1846 = vsub.f32 %v1800, %v1818
    %v1847 = vsub.f32 %v1801, %v1818
    %v1848 = vsub.f32 %v1802, %v1819
    %v1849 = vsub.f32 %v1803, %v1819
    %v1850 = vsub.f32 %v1804, %v1819
    %v1851 = vsub.f32 %v1805, %v1819
    %v1852 = vadd.f32 %v1842, 1e-05
    %v1853 = vadd.f32 %v1843, 1e-05
    %v1854 = vrsqrt.pop %v1852
    %v1855 = vrsqrt.pop %v1853
    %v1856 = vmul.f32 %v1844, %v1854
    %v1857 = vmul.f32 %v1845, %v1854
    %v1858 = vmul.f32 %v1846, %v1854
    %v1859 = vmul.f32 %v1847, %v1854
    %v1860 = vmul.f32 %v1848, %v1855
    %v1861 = vmul.f32 %v1849, %v1855
    %v1862 = vmul.f32 %v1850, %v1855
    %v1863 = vmul.f32 %v1851, %v1855
    %v1865 = vlaneseq
    %v1866 = vshrl.u32 %v1865, 7
    %v1867 = vsub.s32 0, %v1866
    %v1868 = vrot.slane %v1806, %v1867
    %v1869 = vlaneseq
    %v1870 = vshrl.u32 %v1869, 7
    %v1871 = vsub.s32 1, %v1870
    %v1872 = vrot.slane %v1806, %v1871
    %v1873 = vlaneseq
    %v1874 = vshrl.u32 %v1873, 7
    %v1875 = vsub.s32 2, %v1874
    %v1876 = vrot.slane %v1806, %v1875
    %v1877 = vlaneseq
    %v1878 = vshrl.u32 %v1877, 7
    %v1879 = vsub.s32 3, %v1878
    %v1880 = vrot.slane %v1806, %v1879
    %v1885 = vmul.f32 %v1856, %v1868
    %v1886 = vmul.f32 %v1857, %v1872
    %v1887 = vmul.f32 %v1858, %v1876
    %v1888 = vmul.f32 %v1859, %v1880
    %v1889 = vmul.f32 %v1860, %v1868
    %v1890 = vmul.f32 %v1861, %v1872
    %v1891 = vmul.f32 %v1862, %v1876
    %v1892 = vmul.f32 %v1863, %v1880
    %v1894 = vlaneseq
    %v1895 = vshrl.u32 %v1894, 7
    %v1896 = vsub.s32 0, %v1895
    %v1897 = vrot.slane %v1807, %v1896
    %v1898 = vlaneseq
    %v1899 = vshrl.u32 %v1898, 7
    %v1900 = vsub.s32 1, %v1899
    %v1901 = vrot.slane %v1807, %v1900
    %v1902 = vlaneseq
    %v1903 = vshrl.u32 %v1902, 7
    %v1904 = vsub.s32 2, %v1903
    %v1905 = vrot.slane %v1807, %v1904
    %v1906 = vlaneseq
    %v1907 = vshrl.u32 %v1906, 7
    %v1908 = vsub.s32 3, %v1907
    %v1909 = vrot.slane %v1807, %v1908
    %v1914 = vadd.f32 %v1885, %v1897
    %v1915 = vadd.f32 %v1886, %v1901
    %v1916 = vadd.f32 %v1887, %v1905
    %v1917 = vadd.f32 %v1888, %v1909
    %v1918 = vadd.f32 %v1889, %v1897
    %v1919 = vadd.f32 %v1890, %v1901
    %v1920 = vadd.f32 %v1891, %v1905
    %v1921 = vadd.f32 %v1892, %v1909
    %vm1922 = vcmp.gt.f32.partialorder %v1914, 0.0
    %vm1923 = vcmp.gt.f32.partialorder %v1915, 0.0
    %vm1924 = vcmp.gt.f32.partialorder %v1916, 0.0
    %vm1925 = vcmp.gt.f32.partialorder %v1917, 0.0
    %vm1926 = vcmp.gt.f32.partialorder %v1918, 0.0
    %vm1927 = vcmp.gt.f32.partialorder %v1919, 0.0
    %vm1928 = vcmp.gt.f32.partialorder %v1920, 0.0
    %vm1929 = vcmp.gt.f32.partialorder %v1921, 0.0
    %v1930 = vmul.f32 %v1914, 0.2
    %v1931 = vmul.f32 %v1915, 0.2
    %v1932 = vmul.f32 %v1916, 0.2
    %v1933 = vmul.f32 %v1917, 0.2
    %v1934 = vmul.f32 %v1918, 0.2
    %v1935 = vmul.f32 %v1919, 0.2
    %v1936 = vmul.f32 %v1920, 0.2
    %v1937 = vmul.f32 %v1921, 0.2
    %v1938 = vsel %vm1922, %v1914, %v1930
    %v1939 = vsel %vm1923, %v1915, %v1931
    %v1940 = vsel %vm1924, %v1916, %v1932
    %v1941 = vsel %vm1925, %v1917, %v1933
    %v1942 = vsel %vm1926, %v1918, %v1934
    %v1943 = vsel %vm1927, %v1919, %v1935
    %v1944 = vsel %vm1928, %v1920, %v1936
    %v1945 = vsel %vm1929, %v1921, %v1937
    %v1946 = vpack.c.bf16 %v1942, %v1938
    %v1947 = vpack.c.bf16 %v1943, %v1939
    %v1948 = vpack.c.bf16 %v1944, %v1940
    %v1949 = vpack.c.bf16 %v1945, %v1941
    %v1950 = vld [vmem:[#allocation13] sm:$0xff]
    %v1951 = vld [vmem:[#allocation13 + $0x8] sm:$0xff]
    %v1952 = vld [vmem:[#allocation13 + $0x10] sm:$0xff]
    %v1953 = vld [vmem:[#allocation13 + $0x18] sm:$0xff]
    %v1954 = vld [vmem:[#allocation13 + $0x20] sm:$0xff]
    %v1955 = vld [vmem:[#allocation13 + $0x28] sm:$0xff]
    %v1956 = vld [vmem:[#allocation13 + $0x30] sm:$0xff]
    %v1957 = vld [vmem:[#allocation13 + $0x38] sm:$0xff]
    %v1958 = vld [vmem:[#allocation13 + $0x40] sm:$0xff]
    %v1959 = vld [vmem:[#allocation13 + $0x48] sm:$0xff]
    %v1960 = vld [vmem:[#allocation13 + $0x50] sm:$0xff]
    %v1961 = vld [vmem:[#allocation13 + $0x58] sm:$0xff]
    %v1962 = vld [vmem:[#allocation13 + $0x60] sm:$0xff]
    %v1963 = vld [vmem:[#allocation13 + $0x68] sm:$0xff]
    %v1964 = vld [vmem:[#allocation13 + $0x70] sm:$0xff]
    %v1965 = vld [vmem:[#allocation13 + $0x78] sm:$0xff]
    %v1966 = vld [vmem:[#allocation13 + $0x80] sm:$0xff]
    %v1967 = vld [vmem:[#allocation13 + $0x88] sm:$0xff]
    %v1968 = vld [vmem:[#allocation13 + $0x90] sm:$0xff]
    %v1969 = vld [vmem:[#allocation13 + $0x98] sm:$0xff]
    %v1970 = vld [vmem:[#allocation13 + $0xa0] sm:$0xff]
    %v1971 = vld [vmem:[#allocation13 + $0xa8] sm:$0xff]
    %v1972 = vld [vmem:[#allocation13 + $0xb0] sm:$0xff]
    %v1973 = vld [vmem:[#allocation13 + $0xb8] sm:$0xff]
    %v1974 = vld [vmem:[#allocation13 + $0xc0] sm:$0xff]
    %v1975 = vld [vmem:[#allocation13 + $0xc8] sm:$0xff]
    %v1976 = vld [vmem:[#allocation13 + $0xd0] sm:$0xff]
    %v1977 = vld [vmem:[#allocation13 + $0xd8] sm:$0xff]
    %v1978 = vld [vmem:[#allocation13 + $0xe0] sm:$0xff]
    %v1979 = vld [vmem:[#allocation13 + $0xe8] sm:$0xff]
    %v1980 = vld [vmem:[#allocation13 + $0xf0] sm:$0xff]
    %v1981 = vld [vmem:[#allocation13 + $0xf8] sm:$0xff]
    %v1982 = vld [vmem:[#allocation13 + $0x100] sm:$0xff]
    %v1983 = vld [vmem:[#allocation13 + $0x108] sm:$0xff]
    %v1984 = vld [vmem:[#allocation13 + $0x110] sm:$0xff]
    %v1985 = vld [vmem:[#allocation13 + $0x118] sm:$0xff]
    %v1986 = vld [vmem:[#allocation13 + $0x120] sm:$0xff]
    %v1987 = vld [vmem:[#allocation13 + $0x128] sm:$0xff]
    %v1988 = vld [vmem:[#allocation13 + $0x130] sm:$0xff]
    %v1989 = vld [vmem:[#allocation13 + $0x138] sm:$0xff]
    %v1990 = vld [vmem:[#allocation13 + $0x140] sm:$0xff]
    %v1991 = vld [vmem:[#allocation13 + $0x148] sm:$0xff]
    %v1992 = vld [vmem:[#allocation13 + $0x150] sm:$0xff]
    %v1993 = vld [vmem:[#allocation13 + $0x158] sm:$0xff]
    %v1994 = vld [vmem:[#allocation13 + $0x160] sm:$0xff]
    %v1995 = vld [vmem:[#allocation13 + $0x168] sm:$0xff]
    %v1996 = vld [vmem:[#allocation13 + $0x170] sm:$0xff]
    %v1997 = vld [vmem:[#allocation13 + $0x178] sm:$0xff]
    %v1998 = vld [vmem:[#allocation13 + $0x180] sm:$0xff]
    %v1999 = vld [vmem:[#allocation13 + $0x188] sm:$0xff]
    %v2000 = vld [vmem:[#allocation13 + $0x190] sm:$0xff]
    %v2001 = vld [vmem:[#allocation13 + $0x198] sm:$0xff]
    %v2002 = vld [vmem:[#allocation13 + $0x1a0] sm:$0xff]
    %v2003 = vld [vmem:[#allocation13 + $0x1a8] sm:$0xff]
    %v2004 = vld [vmem:[#allocation13 + $0x1b0] sm:$0xff]
    %v2005 = vld [vmem:[#allocation13 + $0x1b8] sm:$0xff]
    %v2006 = vld [vmem:[#allocation13 + $0x1c0] sm:$0xff]
    %v2007 = vld [vmem:[#allocation13 + $0x1c8] sm:$0xff]
    %v2008 = vld [vmem:[#allocation13 + $0x1d0] sm:$0xff]
    %v2009 = vld [vmem:[#allocation13 + $0x1d8] sm:$0xff]
    %v2010 = vld [vmem:[#allocation13 + $0x1e0] sm:$0xff]
    %v2011 = vld [vmem:[#allocation13 + $0x1e8] sm:$0xff]
    %v2012 = vld [vmem:[#allocation13 + $0x1f0] sm:$0xff]
    %v2013 = vld [vmem:[#allocation13 + $0x1f8] sm:$0xff]
    %v2014 = vld [vmem:[%s10] sm:$0x3]
    %v2016 = vlaneseq
    %v2017 = vshrl.u32 %v2016, 7
    %v2018 = vsub.s32 0, %v2017
    %v2019 = vrot.slane %v2014, %v2018
    %v2020 = vlaneseq
    %v2021 = vshrl.u32 %v2020, 7
    %v2022 = vsub.s32 1, %v2021
    %v2023 = vrot.slane %v2014, %v2022
    %v2090 = vunpack.c.l.b16 %v1950
    %v2091 = vunpack.c.h.b16 %v1950
    %v2092 = vunpack.c.l.b16 %v1951
    %v2093 = vunpack.c.h.b16 %v1951
    %v2094 = vunpack.c.l.b16 %v1952
    %v2095 = vunpack.c.h.b16 %v1952
    %v2096 = vunpack.c.l.b16 %v1953
    %v2097 = vunpack.c.h.b16 %v1953
    %v2098 = vunpack.c.l.b16 %v1954
    %v2099 = vunpack.c.h.b16 %v1954
    %v2100 = vunpack.c.l.b16 %v1955
    %v2101 = vunpack.c.h.b16 %v1955
    %v2102 = vunpack.c.l.b16 %v1956
    %v2103 = vunpack.c.h.b16 %v1956
    %v2104 = vunpack.c.l.b16 %v1957
    %v2105 = vunpack.c.h.b16 %v1957
    %v2106 = vunpack.c.l.b16 %v1958
    %v2107 = vunpack.c.h.b16 %v1958
    %v2108 = vunpack.c.l.b16 %v1959
    %v2109 = vunpack.c.h.b16 %v1959
    %v2110 = vunpack.c.l.b16 %v1960
    %v2111 = vunpack.c.h.b16 %v1960
    %v2112 = vunpack.c.l.b16 %v1961
    %v2113 = vunpack.c.h.b16 %v1961
    %v2114 = vunpack.c.l.b16 %v1962
    %v2115 = vunpack.c.h.b16 %v1962
    %v2116 = vunpack.c.l.b16 %v1963
    %v2117 = vunpack.c.h.b16 %v1963
    %v2118 = vunpack.c.l.b16 %v1964
    %v2119 = vunpack.c.h.b16 %v1964
    %v2120 = vunpack.c.l.b16 %v1965
    %v2121 = vunpack.c.h.b16 %v1965
    %v2122 = vunpack.c.l.b16 %v1966
    %v2123 = vunpack.c.h.b16 %v1966
    %v2124 = vunpack.c.l.b16 %v1967
    %v2125 = vunpack.c.h.b16 %v1967
    %v2126 = vunpack.c.l.b16 %v1968
    %v2127 = vunpack.c.h.b16 %v1968
    %v2128 = vunpack.c.l.b16 %v1969
    %v2129 = vunpack.c.h.b16 %v1969
    %v2130 = vunpack.c.l.b16 %v1970
    %v2131 = vunpack.c.h.b16 %v1970
    %v2132 = vunpack.c.l.b16 %v1971
    %v2133 = vunpack.c.h.b16 %v1971
    %v2134 = vunpack.c.l.b16 %v1972
    %v2135 = vunpack.c.h.b16 %v1972
    %v2136 = vunpack.c.l.b16 %v1973
    %v2137 = vunpack.c.h.b16 %v1973
    %v2138 = vunpack.c.l.b16 %v1974
    %v2139 = vunpack.c.h.b16 %v1974
    %v2140 = vunpack.c.l.b16 %v1975
    %v2141 = vunpack.c.h.b16 %v1975
    %v2142 = vunpack.c.l.b16 %v1976
    %v2143 = vunpack.c.h.b16 %v1976
    %v2144 = vunpack.c.l.b16 %v1977
    %v2145 = vunpack.c.h.b16 %v1977
    %v2146 = vunpack.c.l.b16 %v1978
    %v2147 = vunpack.c.h.b16 %v1978
    %v2148 = vunpack.c.l.b16 %v1979
    %v2149 = vunpack.c.h.b16 %v1979
    %v2150 = vunpack.c.l.b16 %v1980
    %v2151 = vunpack.c.h.b16 %v1980
    %v2152 = vunpack.c.l.b16 %v1981
    %v2153 = vunpack.c.h.b16 %v1981
    %v2154 = vunpack.c.l.b16 %v1982
    %v2155 = vunpack.c.h.b16 %v1982
    %v2156 = vunpack.c.l.b16 %v1983
    %v2157 = vunpack.c.h.b16 %v1983
    %v2158 = vunpack.c.l.b16 %v1984
    %v2159 = vunpack.c.h.b16 %v1984
    %v2160 = vunpack.c.l.b16 %v1985
    %v2161 = vunpack.c.h.b16 %v1985
    %v2162 = vunpack.c.l.b16 %v1986
    %v2163 = vunpack.c.h.b16 %v1986
    %v2164 = vunpack.c.l.b16 %v1987
    %v2165 = vunpack.c.h.b16 %v1987
    %v2166 = vunpack.c.l.b16 %v1988
    %v2167 = vunpack.c.h.b16 %v1988
    %v2168 = vunpack.c.l.b16 %v1989
    %v2169 = vunpack.c.h.b16 %v1989
    %v2170 = vunpack.c.l.b16 %v1990
    %v2171 = vunpack.c.h.b16 %v1990
    %v2172 = vunpack.c.l.b16 %v1991
    %v2173 = vunpack.c.h.b16 %v1991
    %v2174 = vunpack.c.l.b16 %v1992
    %v2175 = vunpack.c.h.b16 %v1992
    %v2176 = vunpack.c.l.b16 %v1993
    %v2177 = vunpack.c.h.b16 %v1993
    %v2178 = vunpack.c.l.b16 %v1994
    %v2179 = vunpack.c.h.b16 %v1994
    %v2180 = vunpack.c.l.b16 %v1995
    %v2181 = vunpack.c.h.b16 %v1995
    %v2182 = vunpack.c.l.b16 %v1996
    %v2183 = vunpack.c.h.b16 %v1996
    %v2184 = vunpack.c.l.b16 %v1997
    %v2185 = vunpack.c.h.b16 %v1997
    %v2186 = vunpack.c.l.b16 %v1998
    %v2187 = vunpack.c.h.b16 %v1998
    %v2188 = vunpack.c.l.b16 %v1999
    %v2189 = vunpack.c.h.b16 %v1999
    %v2190 = vunpack.c.l.b16 %v2000
    %v2191 = vunpack.c.h.b16 %v2000
    %v2192 = vunpack.c.l.b16 %v2001
    %v2193 = vunpack.c.h.b16 %v2001
    %v2194 = vunpack.c.l.b16 %v2002
    %v2195 = vunpack.c.h.b16 %v2002
    %v2196 = vunpack.c.l.b16 %v2003
    %v2197 = vunpack.c.h.b16 %v2003
    %v2198 = vunpack.c.l.b16 %v2004
    %v2199 = vunpack.c.h.b16 %v2004
    %v2200 = vunpack.c.l.b16 %v2005
    %v2201 = vunpack.c.h.b16 %v2005
    %v2202 = vunpack.c.l.b16 %v2006
    %v2203 = vunpack.c.h.b16 %v2006
    %v2204 = vunpack.c.l.b16 %v2007
    %v2205 = vunpack.c.h.b16 %v2007
    %v2206 = vunpack.c.l.b16 %v2008
    %v2207 = vunpack.c.h.b16 %v2008
    %v2208 = vunpack.c.l.b16 %v2009
    %v2209 = vunpack.c.h.b16 %v2009
    %v2210 = vunpack.c.l.b16 %v2010
    %v2211 = vunpack.c.h.b16 %v2010
    %v2212 = vunpack.c.l.b16 %v2011
    %v2213 = vunpack.c.h.b16 %v2011
    %v2214 = vunpack.c.l.b16 %v2012
    %v2215 = vunpack.c.h.b16 %v2012
    %v2216 = vunpack.c.l.b16 %v2013
    %v2217 = vunpack.c.h.b16 %v2013
    %v2218 = vpack.c.b16 %v2092, %v2090
    %v2219 = vpack.c.b16 %v2093, %v2091
    %v2220 = vpack.c.b16 %v2096, %v2094
    %v2221 = vpack.c.b16 %v2097, %v2095
    %v2222 = vpack.c.b16 %v2100, %v2098
    %v2223 = vpack.c.b16 %v2101, %v2099
    %v2224 = vpack.c.b16 %v2104, %v2102
    %v2225 = vpack.c.b16 %v2105, %v2103
    %v2226 = vpack.c.b16 %v2108, %v2106
    %v2227 = vpack.c.b16 %v2109, %v2107
    %v2228 = vpack.c.b16 %v2112, %v2110
    %v2229 = vpack.c.b16 %v2113, %v2111
    %v2230 = vpack.c.b16 %v2116, %v2114
    %v2231 = vpack.c.b16 %v2117, %v2115
    %v2232 = vpack.c.b16 %v2120, %v2118
    %v2233 = vpack.c.b16 %v2121, %v2119
    %v2234 = vpack.c.b16 %v2124, %v2122
    %v2235 = vpack.c.b16 %v2125, %v2123
    %v2236 = vpack.c.b16 %v2128, %v2126
    %v2237 = vpack.c.b16 %v2129, %v2127
    %v2238 = vpack.c.b16 %v2132, %v2130
    %v2239 = vpack.c.b16 %v2133, %v2131
    %v2240 = vpack.c.b16 %v2136, %v2134
    %v2241 = vpack.c.b16 %v2137, %v2135
    %v2242 = vpack.c.b16 %v2140, %v2138
    %v2243 = vpack.c.b16 %v2141, %v2139
    %v2244 = vpack.c.b16 %v2144, %v2142
    %v2245 = vpack.c.b16 %v2145, %v2143
    %v2246 = vpack.c.b16 %v2148, %v2146
    %v2247 = vpack.c.b16 %v2149, %v2147
    %v2248 = vpack.c.b16 %v2152, %v2150
    %v2249 = vpack.c.b16 %v2153, %v2151
    %v2250 = vpack.c.b16 %v2156, %v2154
    %v2251 = vpack.c.b16 %v2157, %v2155
    %v2252 = vpack.c.b16 %v2160, %v2158
    %v2253 = vpack.c.b16 %v2161, %v2159
    %v2254 = vpack.c.b16 %v2164, %v2162
    %v2255 = vpack.c.b16 %v2165, %v2163
    %v2256 = vpack.c.b16 %v2168, %v2166
    %v2257 = vpack.c.b16 %v2169, %v2167
    %v2258 = vpack.c.b16 %v2172, %v2170
    %v2259 = vpack.c.b16 %v2173, %v2171
    %v2260 = vpack.c.b16 %v2176, %v2174
    %v2261 = vpack.c.b16 %v2177, %v2175
    %v2262 = vpack.c.b16 %v2180, %v2178
    %v2263 = vpack.c.b16 %v2181, %v2179
    %v2264 = vpack.c.b16 %v2184, %v2182
    %v2265 = vpack.c.b16 %v2185, %v2183
    %v2266 = vpack.c.b16 %v2188, %v2186
    %v2267 = vpack.c.b16 %v2189, %v2187
    %v2268 = vpack.c.b16 %v2192, %v2190
    %v2269 = vpack.c.b16 %v2193, %v2191
    %v2270 = vpack.c.b16 %v2196, %v2194
    %v2271 = vpack.c.b16 %v2197, %v2195
    %v2272 = vpack.c.b16 %v2200, %v2198
    %v2273 = vpack.c.b16 %v2201, %v2199
    %v2274 = vpack.c.b16 %v2204, %v2202
    %v2275 = vpack.c.b16 %v2205, %v2203
    %v2276 = vpack.c.b16 %v2208, %v2206
    %v2277 = vpack.c.b16 %v2209, %v2207
    %v2278 = vpack.c.b16 %v2212, %v2210
    %v2279 = vpack.c.b16 %v2213, %v2211
    %v2280 = vpack.c.b16 %v2216, %v2214
    %v2281 = vpack.c.b16 %v2217, %v2215
    %2346 = vmatprep.subr.bf16.mxu0 %v2233
    %2347 = vmatpush1.bf16.msra.mxu0 %v2232
    %2348 = vmatprep.subr.bf16.mxu0 %v2231
    %2349 = vmatpush1.bf16.msra.mxu0 %v2230
    %2350 = vmatprep.subr.bf16.mxu0 %v2229
    %2351 = vmatpush1.bf16.msra.mxu0 %v2228
    %2352 = vmatprep.subr.bf16.mxu0 %v2227
    %2353 = vmatpush1.bf16.msra.mxu0 %v2226
    %2354 = vmatprep.subr.bf16.mxu0 %v2225
    %2355 = vmatpush1.bf16.msra.mxu0 %v2224
    %2356 = vmatprep.subr.bf16.mxu0 %v2223
    %2357 = vmatpush1.bf16.msra.mxu0 %v2222
    %2358 = vmatprep.subr.bf16.mxu0 %v2221
    %2359 = vmatpush1.bf16.msra.mxu0 %v2220
    %2360 = vmatprep.subr.bf16.mxu0 %v2219
    %2361 = vmatpush1.bf16.msra.mxu0 %v2218
    %2362 = vmatprep.subr.bf16.mxu0 %v2249
    %2363 = vmatpush2.bf16.msra.mxu0 %v2248
    %2364 = vmatprep.subr.bf16.mxu0 %v2247
    %2365 = vmatpush2.bf16.msra.mxu0 %v2246
    %2366 = vmatprep.subr.bf16.mxu0 %v2245
    %2367 = vmatpush2.bf16.msra.mxu0 %v2244
    %2368 = vmatprep.subr.bf16.mxu0 %v2243
    %2369 = vmatpush2.bf16.msra.mxu0 %v2242
    %2370 = vmatprep.subr.bf16.mxu0 %v2241
    %2371 = vmatpush2.bf16.msra.mxu0 %v2240
    %2372 = vmatprep.subr.bf16.mxu0 %v2239
    %2373 = vmatpush2.bf16.msra.mxu0 %v2238
    %2374 = vmatprep.subr.bf16.mxu0 %v2237
    %2375 = vmatpush2.bf16.msra.mxu0 %v2236
    %2376 = vmatprep.subr.bf16.mxu0 %v2235
    %2377 = vmatpush2.bf16.msra.mxu0 %v2234
    %2378 = vmatprep.mubr.bf16.mxu0 %v1947
    %2379 = vmatmul.mubr.bf16.gmra.mxu0 %v1946
    %v2380 = vpop.f32.mrf.mxu0
    %v2381 = vadd.f32 %v2019, %v2380
    %v2382 = vpop.f32.mrf.mxu0
    %v2383 = vadd.f32 %v2023, %v2382
    %v2384 = vpop.f32.mrf.mxu0
    %v2385 = vadd.f32 %v2019, %v2384
    %v2386 = vpop.f32.mrf.mxu0
    %v2387 = vadd.f32 %v2023, %v2386
    %2388 = vdwg.mxu0
    %2389 = vmatprep.subr.bf16.mxu0 %v2265
    %2390 = vmatpush1.bf16.msra.mxu0 %v2264
    %2391 = vmatprep.subr.bf16.mxu0 %v2263
    %2392 = vmatpush1.bf16.msra.mxu0 %v2262
    %2393 = vmatprep.subr.bf16.mxu0 %v2261
    %2394 = vmatpush1.bf16.msra.mxu0 %v2260
    %2395 = vmatprep.subr.bf16.mxu0 %v2259
    %2396 = vmatpush1.bf16.msra.mxu0 %v2258
    %2397 = vmatprep.subr.bf16.mxu0 %v2257
    %2398 = vmatpush1.bf16.msra.mxu0 %v2256
    %2399 = vmatprep.subr.bf16.mxu0 %v2255
    %2400 = vmatpush1.bf16.msra.mxu0 %v2254
    %2401 = vmatprep.subr.bf16.mxu0 %v2253
    %2402 = vmatpush1.bf16.msra.mxu0 %v2252
    %2403 = vmatprep.subr.bf16.mxu0 %v2251
    %2404 = vmatpush1.bf16.msra.mxu0 %v2250
    %2405 = vmatprep.subr.bf16.mxu0 %v2281
    %2406 = vmatpush2.bf16.msra.mxu0 %v2280
    %2407 = vmatprep.subr.bf16.mxu0 %v2279
    %2408 = vmatpush2.bf16.msra.mxu0 %v2278
    %2409 = vmatprep.subr.bf16.mxu0 %v2277
    %2410 = vmatpush2.bf16.msra.mxu0 %v2276
    %2411 = vmatprep.subr.bf16.mxu0 %v2275
    %2412 = vmatpush2.bf16.msra.mxu0 %v2274
    %2413 = vmatprep.subr.bf16.mxu0 %v2273
    %2414 = vmatpush2.bf16.msra.mxu0 %v2272
    %2415 = vmatprep.subr.bf16.mxu0 %v2271
    %2416 = vmatpush2.bf16.msra.mxu0 %v2270
    %2417 = vmatprep.subr.bf16.mxu0 %v2269
    %2418 = vmatpush2.bf16.msra.mxu0 %v2268
    %2419 = vmatprep.subr.bf16.mxu0 %v2267
    %2420 = vmatpush2.bf16.msra.mxu0 %v2266
    %2421 = vmatprep.mubr.bf16.mxu0 %v1949
    %2422 = vmatmul.mubr.bf16.gmra.mxu0 %v1948
    %v2423 = vpop.f32.mrf.mxu0
    %v2424 = vadd.f32 %v2381, %v2423
    %v2425 = vpop.f32.mrf.mxu0
    %v2426 = vadd.f32 %v2383, %v2425
    %v2427 = vpop.f32.mrf.mxu0
    %v2428 = vadd.f32 %v2385, %v2427
    %v2429 = vpop.f32.mrf.mxu0
    %v2430 = vadd.f32 %v2387, %v2429
    %2431 = vdwg.mxu0
    %2432 = vst [vmem:[#allocation14] sm:$0xff] %v2424
    %2433 = vst [vmem:[#allocation14 + $0x8] sm:$0xff] %v2426
    %2434 = vst [vmem:[#allocation14 + $0x10] sm:$0xff] %v2428
    %2435 = vst [vmem:[#allocation14 + $0x18] sm:$0xff] %v2430
    // Predicated region
    $region74: #{tpu_custom_call.1} parent=1 // pred_check
      _
    $region75: #{tpu_custom_call.1} parent=1 // pred_check_branch
      %2437 = sbr.rel (0) target = $region77
    $region76: #{tpu_custom_call.1} parent=1 // pred_region
      %s2439 = ssub.s32 512, 512
      %2440 = vsyncadd [#allocation4], %s2439
      %s2441 = sshll.u32 [#allocation14], 4
      %s2442 = int_to_ptr.vmem [resolvable:$true] %s2441
      %2447 = dma.vmem_to_hbm [thread:$0]  %s2442, 512, %s11, [#allocation4], 256, 256, 16
    $region77: #{tpu_custom_call.1} parent=1 // pred_fallthru
      _
    // Predicated region
    $region78: #{tpu_custom_call.1} parent=1 // pred_check
      _
    $region79: #{tpu_custom_call.1} parent=1 // pred_check_branch
      %2449 = sbr.rel (0) target = $region81
    $region80: #{tpu_custom_call.1} parent=1 // pred_region
      %2450 = dma.done [#allocation4], 512
    $region81: #{tpu_custom_call.1} parent=1 // pred_fallthru
      _
    %2451 = vsyncpa [#allocation3], 1
    %2452 = vsyncpa [#allocation6], 1
    %2453 = vsyncpa [#allocation9], 1
    %2454 = vsyncpa [#allocation12], 1
    %2455 = vsyncpa [#allocation4], 1

</llo_original>
